<compile_context>
chip_gen: v7x
topology: tpu7x:2x2x1
jax: 0.10.0
libtpu: 0.0.40
codegen_flags: <defaults>
</compile_context>

<pallas_src>
import functools

import jax
import jax.numpy as jnp
from jax import lax
from jax.experimental import pallas as pl
from jax.experimental.pallas import tpu as pltpu


_ROW_CHUNK = 8            # rows per gather chunk (one sublane group)
_MAX_INFLIGHT_ROWS = 32   # rolling-window depth of in-flight row copies
_SMEM_ID_LIMIT = 1 << 17  # conservative cap on ids held in SMEM via scalar prefetch


def _vmem_capacity_bytes() -> int:
    try:
        return int(pltpu.get_tpu_info().vmem_capacity_bytes)
    except Exception:
        return 64 << 20   # conservative default (v7x per-TC VMEM)


def _pick_row_tile(seq_len: int, max_tile: int) -> int:
    """Largest multiple-of-8 divisor of seq_len that is <= max_tile."""
    max_tile = max(8, int(max_tile))
    if seq_len <= max_tile:
        return seq_len
    for t in range(max_tile - max_tile % 8, 7, -8):
        if seq_len % t == 0:
            return t
    return seq_len  # no clean multiple-of-8 divisor: one full-length tile per step


def _gather_plan(ts: int):
    """Chunking/rolling-window plan shared by kernel and wrapper (ts is static)."""
    ch = _ROW_CHUNK if ts % _ROW_CHUNK == 0 else 1
    n_chunks = ts // ch
    w_chunks = max(1, min(n_chunks, _MAX_INFLIGHT_ROWS // ch))
    # 2x slots so chunk c+w can be issued *before* chunk c is retired (fuller window,
    # no semaphore-slot collisions: chunk c's slot is reused earliest by chunk c+2w,
    # which is issued only after chunk c has been waited).
    n_slots = min(n_chunks, 2 * w_chunks)
    return ch, n_chunks, w_chunks, n_slots


def embedding_kernel(ids_ref, tok_ref, pos_ref, out_ref, sem):
    """One grid step = one (seq-tile, batch) output block.

    ids_ref : (B*S,) int32 in SMEM (scalar prefetch)        -- flattened token ids
    tok_ref : (V, D) table, VMEM-resident block or HBM ref  -- token embedding table
    pos_ref : (TS, D) VMEM                                  -- positional tile
    out_ref : (TS, D) VMEM                                  -- output block (batch dim squeezed)
    sem     : (N_SLOTS,) DMA semaphores                     -- one per in-flight chunk slot
    """
    s = pl.program_id(0)
    b = pl.program_id(1)
    ts, _ = out_ref.shape
    seq_len = pl.num_programs(0) * ts
    vocab = tok_ref.shape[0]
    base = b * seq_len + s * ts

    ch, n_chunks, w_chunks, n_slots = _gather_plan(ts)

    def row_copy(src_row, dst_row, slot):
        # One token row: table row -> row of the output VMEM block.  All rows are the
        # same size, so waiting via a descriptor built with src row 0 is equivalent.
        return pltpu.make_async_copy(
            tok_ref.at[pl.ds(src_row, 1), :],
            out_ref.at[pl.ds(dst_row, 1), :],
            sem.at[slot],
        )

    def issue_chunk(c):
        slot = c % n_slots
        row0 = c * ch
        for r in range(ch):  # statically unrolled: ch descriptors issued back-to-back
            # Clamp so malformed ids cannot address outside the table.
            # (PyTorch nn.Embedding would raise; here we gather row 0 / V-1 instead.)
            tid = ids_ref[base + row0 + r]
            tid = jnp.minimum(jnp.maximum(tid, 0), vocab - 1)
            row_copy(tid, row0 + r, slot).start()

    def wait_chunk(c):
        slot = c % n_slots
        row0 = c * ch
        for r in range(ch):
            row_copy(0, row0 + r, slot).wait()

    # Prime the rolling window.
    for c in range(w_chunks):
        issue_chunk(c)

    def body(c, carry):
        # Keep the window full: issue the next chunk before retiring the current one.
        @pl.when(c + w_chunks < n_chunks)
        def _():
            issue_chunk(c + w_chunks)

        # Retire chunk c (waits name out_ref rows as the DMA destination, ordering
        # the add below after the data has landed).
        wait_chunk(c)

        if ch % 8 == 0:
            # Overlapped positional add: this chunk's rows are ready while later
            # chunks' copies are still in flight (VALU/vst slots are otherwise idle).
            rows = pl.ds(pl.multiple_of(c * ch, ch), ch)
            out_ref[rows, :] = out_ref[rows, :] + pos_ref[rows, :]
        return carry

    lax.fori_loop(0, n_chunks, body, 0, unroll=min(2, n_chunks))

    if ch % 8 != 0:
        # Odd tile sizes: single full-tile add after all chunks have been retired.
        out_ref[...] = out_ref[...] + pos_ref[...]


@functools.partial(jax.jit, static_argnames=("table_in_vmem",))
def embedding_forward(x, token_embed, pos_embed, *, table_in_vmem=None):
    """x: (B, S) int; token_embed: (V, D); pos_embed: (max_seq_len, D) -> (B, S, D)."""
    B, S = x.shape
    V, D = token_embed.shape
    max_seq_len = pos_embed.shape[0]

    if D % 128 != 0:
        # TODO(synk): pad D up to a multiple of 128 (and slice the output) instead of failing.
        raise ValueError(f"d_model={D} must be a multiple of 128 for lane-dense rows")
    if S > max_seq_len:
        raise ValueError(f"seq_len={S} exceeds max_seq_len={max_seq_len}")
    if B * S > _SMEM_ID_LIMIT:
        # TODO(synk): switch ids to a per-tile SMEM-blocked operand for very long contexts.
        raise ValueError("token-id count exceeds the scalar-prefetch SMEM budget")

    dtype = token_embed.dtype
    itemsize = jnp.dtype(dtype).itemsize
    vmem_cap = _vmem_capacity_bytes()
    headroom = 4 << 20
    table_bytes = V * D * itemsize

    # Fast path: keep the whole token table VMEM-resident (double-buffered by the
    # pipeline, constant block index => fetched once) when it fits ~1/4 of physical
    # VMEM (16 MiB on v7x, 32 MiB on v5e/v6e).  Row gathers then never touch HBM.
    if table_in_vmem is None:
        table_in_vmem = (2 * table_bytes) <= (vmem_cap // 4)

    tiles_budget = vmem_cap - headroom - (2 * table_bytes if table_in_vmem else 0)
    max_rows = 1024 if vmem_cap >= (100 << 20) else 256      # 128 MiB parts vs v7x
    row_cap = max(8, tiles_budget // (4 * D * itemsize))     # out + pos, double-buffered
    TS = _pick_row_tile(S, min(max_rows, row_cap))
    NS = S // TS
    _, _, _, n_slots = _gather_plan(TS)

    ids_flat = x.reshape(-1).astype(jnp.int32)   # -> SMEM via scalar prefetch
    pos_s = pos_embed[:S]                        # only the rows actually used

    tile_bytes = TS * D * itemsize
    needed = headroom + 4 * tile_bytes + (2 * table_bytes if table_in_vmem else 0)
    vmem_limit = int(min(vmem_cap, max(needed, 32 << 20)))   # never above physical VMEM

    if table_in_vmem:
        tok_spec = pl.BlockSpec((V, D), lambda s, b, ids: (0, 0))   # resident in VMEM
    else:
        tok_spec = pl.BlockSpec(memory_space=pl.ANY)                # stays in HBM

    grid_spec = pltpu.PrefetchScalarGridSpec(
        num_scalar_prefetch=1,                       # ids -> SMEM
        grid=(NS, B),                                # seq tiles leading: pos-tile reuse
        in_specs=[                                   # across b + finer dual-TC sharding
            tok_spec,
            pl.BlockSpec((TS, D), lambda s, b, ids: (s, 0)),        # positional tile
        ],
        out_specs=pl.BlockSpec((None, TS, D), lambda s, b, ids: (b, s, 0)),
        scratch_shapes=[pltpu.SemaphoreType.DMA((n_slots,))],
    )

    return pl.pallas_call(
        embedding_kernel,
        out_shape=jax.ShapeDtypeStruct((B, S, D), dtype),
        grid_spec=grid_spec,
        compiler_params=pltpu.CompilerParams(
            dimension_semantics=("parallel", "parallel"),
            vmem_limit_bytes=vmem_limit,
        ),
    )(ids_flat, token_embed, pos_s)


if __name__ == "__main__":
    vocab_size, d_model, max_seq_len = 512, 256, 128
    batch, seq_len = 2, 8

    key = jax.random.PRNGKey(0)
    k_tok, k_pos, k_ids, k_ids2 = jax.random.split(key, 4)

    # Deterministic parameter init mirroring torch.randn(...) * 0.02
    token_embed = (0.02 * jax.random.normal(k_tok, (vocab_size, d_model))).astype(jnp.float32)
    pos_embed = (0.02 * jax.random.normal(k_pos, (max_seq_len, d_model))).astype(jnp.float32)

    # Path 1: small table -> VMEM-resident fast path (auto-selected).
    x = jax.random.randint(k_ids, (batch, seq_len), 0, vocab_size, dtype=jnp.int32)
    out = jax.block_until_ready(embedding_forward(x, token_embed, pos_embed))
    ref = token_embed[x] + pos_embed[None, :seq_len, :]
    assert out.shape == (batch, seq_len, d_model)
    assert out.dtype == jnp.float32
    assert jnp.allclose(out, ref, atol=1e-5), "VMEM fast path mismatch vs reference"

    # Path 2: force the large-table HBM row-gather path (longer sequence exercises
    # the rolling DMA window, chunk re-issue and the overlapped positional add).
    seq_len2 = 128
    x2 = jax.random.randint(k_ids2, (batch, seq_len2), 0, vocab_size, dtype=jnp.int32)
    out2 = jax.block_until_ready(
        embedding_forward(x2, token_embed, pos_embed, table_in_vmem=False))
    ref2 = token_embed[x2] + pos_embed[None, :seq_len2, :]
    assert jnp.allclose(out2, ref2, atol=1e-5), "HBM gather path mismatch vs reference"

    print("KERNEL_OK")
</pallas_src>

<mosaic_0001>
module attributes {stable_mosaic.version = 11 : i64} {
  func.func @embedding_kernel(%arg0: i32, %arg1: i32, %arg2: memref<16xi32, #tpu.memory_space<smem>>, %arg3: memref<512x256xf32, #tpu.memory_space<vmem>>, %arg4: memref<8x256xf32, #tpu.memory_space<vmem>>, %arg5: memref<1x8x256xf32, #tpu.memory_space<vmem>>, %arg6: memref<1x!tpu.dma_semaphore, #tpu.memory_space<semaphore_mem>>) attributes {dimension_semantics = [#tpu.dimension_semantics<parallel>, #tpu.dimension_semantics<parallel>], iteration_bounds = array<i64: 1, 2>, scalar_prefetch = 1 : i64, scratch_operands = 1 : i64, tpu.core_type = #tpu.core_type<tc>, window_params = [{pipeline_mode = #tpu.pipeline_mode<synchronous>, transform_indices = @transform_0, window_bounds = array<i64: 512, 256>}, {transform_indices = @transform_1, window_bounds = array<i64: 8, 256>}, {transform_indices = @transform_2, window_bounds = array<i64: 1, 8, 256>}]} {
    %c8_i32 = arith.constant 8 : i32
    %0 = arith.muli %arg1, %c8_i32 : i32
    %c8_i32_0 = arith.constant 8 : i32
    %1 = arith.muli %arg0, %c8_i32_0 : i32
    %2 = arith.addi %0, %1 : i32
    %c0_i32 = arith.constant 0 : i32
    %3 = arith.addi %2, %c0_i32 : i32
    %c0_i32_1 = arith.constant 0 : i32
    %4 = arith.addi %3, %c0_i32_1 : i32
    %5 = arith.index_cast %4 : i32 to index
    %6 = memref.load %arg2[%5] : memref<16xi32, #tpu.memory_space<smem>>
    %c0_i32_2 = arith.constant 0 : i32
    %7 = arith.maxsi %6, %c0_i32_2 : i32
    %c511_i32 = arith.constant 511 : i32
    %8 = arith.minsi %7, %c511_i32 : i32
    %c0_i32_3 = arith.constant 0 : i32
    %c0_i32_4 = arith.constant 0 : i32
    %9 = tpu.memref_slice %arg3[%8, %c0_i32_4] : memref<512x256xf32, #tpu.memory_space<vmem>> -> memref<1x256xf32, #tpu.memory_space<vmem>>
    %c0_i32_5 = arith.constant 0 : i32
    %c0_i32_6 = arith.constant 0 : i32
    %c0_i32_7 = arith.constant 0 : i32
    %10 = tpu.memref_slice %arg5[%c0_i32_5, %c0_i32_6, %c0_i32_7] : memref<1x8x256xf32, #tpu.memory_space<vmem>> -> memref<1x1x256xf32, #tpu.memory_space<vmem>>
    %11 = tpu.memref_squeeze %10 : memref<1x1x256xf32, #tpu.memory_space<vmem>> -> memref<1x256xf32, #tpu.memory_space<vmem>>
    %12 = tpu.memref_slice %arg6[%c0_i32_3] : memref<1x!tpu.dma_semaphore, #tpu.memory_space<semaphore_mem>> -> memref<1x!tpu.dma_semaphore, #tpu.memory_space<semaphore_mem>>
    %13 = tpu.memref_squeeze %12 : memref<1x!tpu.dma_semaphore, #tpu.memory_space<semaphore_mem>> -> memref<!tpu.dma_semaphore, #tpu.memory_space<semaphore_mem>>
    tpu.enqueue_dma source(%9 : memref<1x256xf32, #tpu.memory_space<vmem>>) target(%11 : memref<1x256xf32, #tpu.memory_space<vmem>>) target_semaphore(%13 : memref<!tpu.dma_semaphore, #tpu.memory_space<semaphore_mem>>)
    %c0_i32_8 = arith.constant 0 : i32
    %14 = arith.addi %2, %c0_i32_8 : i32
    %c1_i32 = arith.constant 1 : i32
    %15 = arith.addi %14, %c1_i32 : i32
    %16 = arith.index_cast %15 : i32 to index
    %17 = memref.load %arg2[%16] : memref<16xi32, #tpu.memory_space<smem>>
    %c0_i32_9 = arith.constant 0 : i32
    %18 = arith.maxsi %17, %c0_i32_9 : i32
    %c511_i32_10 = arith.constant 511 : i32
    %19 = arith.minsi %18, %c511_i32_10 : i32
    %c0_i32_11 = arith.constant 0 : i32
    %c0_i32_12 = arith.constant 0 : i32
    %20 = tpu.memref_slice %arg3[%19, %c0_i32_12] : memref<512x256xf32, #tpu.memory_space<vmem>> -> memref<1x256xf32, #tpu.memory_space<vmem>>
    %c0_i32_13 = arith.constant 0 : i32
    %c1_i32_14 = arith.constant 1 : i32
    %c0_i32_15 = arith.constant 0 : i32
    %21 = tpu.memref_slice %arg5[%c0_i32_13, %c1_i32_14, %c0_i32_15] : memref<1x8x256xf32, #tpu.memory_space<vmem>> -> memref<1x1x256xf32, #tpu.memory_space<vmem>>
    %22 = tpu.memref_squeeze %21 : memref<1x1x256xf32, #tpu.memory_space<vmem>> -> memref<1x256xf32, #tpu.memory_space<vmem>>
    %23 = tpu.memref_slice %arg6[%c0_i32_11] : memref<1x!tpu.dma_semaphore, #tpu.memory_space<semaphore_mem>> -> memref<1x!tpu.dma_semaphore, #tpu.memory_space<semaphore_mem>>
    %24 = tpu.memref_squeeze %23 : memref<1x!tpu.dma_semaphore, #tpu.memory_space<semaphore_mem>> -> memref<!tpu.dma_semaphore, #tpu.memory_space<semaphore_mem>>
    tpu.enqueue_dma source(%20 : memref<1x256xf32, #tpu.memory_space<vmem>>) target(%22 : memref<1x256xf32, #tpu.memory_space<vmem>>) target_semaphore(%24 : memref<!tpu.dma_semaphore, #tpu.memory_space<semaphore_mem>>)
    %c0_i32_16 = arith.constant 0 : i32
    %25 = arith.addi %2, %c0_i32_16 : i32
    %c2_i32 = arith.constant 2 : i32
    %26 = arith.addi %25, %c2_i32 : i32
    %27 = arith.index_cast %26 : i32 to index
    %28 = memref.load %arg2[%27] : memref<16xi32, #tpu.memory_space<smem>>
    %c0_i32_17 = arith.constant 0 : i32
    %29 = arith.maxsi %28, %c0_i32_17 : i32
    %c511_i32_18 = arith.constant 511 : i32
    %30 = arith.minsi %29, %c511_i32_18 : i32
    %c0_i32_19 = arith.constant 0 : i32
    %c0_i32_20 = arith.constant 0 : i32
    %31 = tpu.memref_slice %arg3[%30, %c0_i32_20] : memref<512x256xf32, #tpu.memory_space<vmem>> -> memref<1x256xf32, #tpu.memory_space<vmem>>
    %c0_i32_21 = arith.constant 0 : i32
    %c2_i32_22 = arith.constant 2 : i32
    %c0_i32_23 = arith.constant 0 : i32
    %32 = tpu.memref_slice %arg5[%c0_i32_21, %c2_i32_22, %c0_i32_23] : memref<1x8x256xf32, #tpu.memory_space<vmem>> -> memref<1x1x256xf32, #tpu.memory_space<vmem>>
    %33 = tpu.memref_squeeze %32 : memref<1x1x256xf32, #tpu.memory_space<vmem>> -> memref<1x256xf32, #tpu.memory_space<vmem>>
    %34 = tpu.memref_slice %arg6[%c0_i32_19] : memref<1x!tpu.dma_semaphore, #tpu.memory_space<semaphore_mem>> -> memref<1x!tpu.dma_semaphore, #tpu.memory_space<semaphore_mem>>
    %35 = tpu.memref_squeeze %34 : memref<1x!tpu.dma_semaphore, #tpu.memory_space<semaphore_mem>> -> memref<!tpu.dma_semaphore, #tpu.memory_space<semaphore_mem>>
    tpu.enqueue_dma source(%31 : memref<1x256xf32, #tpu.memory_space<vmem>>) target(%33 : memref<1x256xf32, #tpu.memory_space<vmem>>) target_semaphore(%35 : memref<!tpu.dma_semaphore, #tpu.memory_space<semaphore_mem>>)
    %c0_i32_24 = arith.constant 0 : i32
    %36 = arith.addi %2, %c0_i32_24 : i32
    %c3_i32 = arith.constant 3 : i32
    %37 = arith.addi %36, %c3_i32 : i32
    %38 = arith.index_cast %37 : i32 to index
    %39 = memref.load %arg2[%38] : memref<16xi32, #tpu.memory_space<smem>>
    %c0_i32_25 = arith.constant 0 : i32
    %40 = arith.maxsi %39, %c0_i32_25 : i32
    %c511_i32_26 = arith.constant 511 : i32
    %41 = arith.minsi %40, %c511_i32_26 : i32
    %c0_i32_27 = arith.constant 0 : i32
    %c0_i32_28 = arith.constant 0 : i32
    %42 = tpu.memref_slice %arg3[%41, %c0_i32_28] : memref<512x256xf32, #tpu.memory_space<vmem>> -> memref<1x256xf32, #tpu.memory_space<vmem>>
    %c0_i32_29 = arith.constant 0 : i32
    %c3_i32_30 = arith.constant 3 : i32
    %c0_i32_31 = arith.constant 0 : i32
    %43 = tpu.memref_slice %arg5[%c0_i32_29, %c3_i32_30, %c0_i32_31] : memref<1x8x256xf32, #tpu.memory_space<vmem>> -> memref<1x1x256xf32, #tpu.memory_space<vmem>>
    %44 = tpu.memref_squeeze %43 : memref<1x1x256xf32, #tpu.memory_space<vmem>> -> memref<1x256xf32, #tpu.memory_space<vmem>>
    %45 = tpu.memref_slice %arg6[%c0_i32_27] : memref<1x!tpu.dma_semaphore, #tpu.memory_space<semaphore_mem>> -> memref<1x!tpu.dma_semaphore, #tpu.memory_space<semaphore_mem>>
    %46 = tpu.memref_squeeze %45 : memref<1x!tpu.dma_semaphore, #tpu.memory_space<semaphore_mem>> -> memref<!tpu.dma_semaphore, #tpu.memory_space<semaphore_mem>>
    tpu.enqueue_dma source(%42 : memref<1x256xf32, #tpu.memory_space<vmem>>) target(%44 : memref<1x256xf32, #tpu.memory_space<vmem>>) target_semaphore(%46 : memref<!tpu.dma_semaphore, #tpu.memory_space<semaphore_mem>>)
    %c0_i32_32 = arith.constant 0 : i32
    %47 = arith.addi %2, %c0_i32_32 : i32
    %c4_i32 = arith.constant 4 : i32
    %48 = arith.addi %47, %c4_i32 : i32
    %49 = arith.index_cast %48 : i32 to index
    %50 = memref.load %arg2[%49] : memref<16xi32, #tpu.memory_space<smem>>
    %c0_i32_33 = arith.constant 0 : i32
    %51 = arith.maxsi %50, %c0_i32_33 : i32
    %c511_i32_34 = arith.constant 511 : i32
    %52 = arith.minsi %51, %c511_i32_34 : i32
    %c0_i32_35 = arith.constant 0 : i32
    %c0_i32_36 = arith.constant 0 : i32
    %53 = tpu.memref_slice %arg3[%52, %c0_i32_36] : memref<512x256xf32, #tpu.memory_space<vmem>> -> memref<1x256xf32, #tpu.memory_space<vmem>>
    %c0_i32_37 = arith.constant 0 : i32
    %c4_i32_38 = arith.constant 4 : i32
    %c0_i32_39 = arith.constant 0 : i32
    %54 = tpu.memref_slice %arg5[%c0_i32_37, %c4_i32_38, %c0_i32_39] : memref<1x8x256xf32, #tpu.memory_space<vmem>> -> memref<1x1x256xf32, #tpu.memory_space<vmem>>
    %55 = tpu.memref_squeeze %54 : memref<1x1x256xf32, #tpu.memory_space<vmem>> -> memref<1x256xf32, #tpu.memory_space<vmem>>
    %56 = tpu.memref_slice %arg6[%c0_i32_35] : memref<1x!tpu.dma_semaphore, #tpu.memory_space<semaphore_mem>> -> memref<1x!tpu.dma_semaphore, #tpu.memory_space<semaphore_mem>>
    %57 = tpu.memref_squeeze %56 : memref<1x!tpu.dma_semaphore, #tpu.memory_space<semaphore_mem>> -> memref<!tpu.dma_semaphore, #tpu.memory_space<semaphore_mem>>
    tpu.enqueue_dma source(%53 : memref<1x256xf32, #tpu.memory_space<vmem>>) target(%55 : memref<1x256xf32, #tpu.memory_space<vmem>>) target_semaphore(%57 : memref<!tpu.dma_semaphore, #tpu.memory_space<semaphore_mem>>)
    %c0_i32_40 = arith.constant 0 : i32
    %58 = arith.addi %2, %c0_i32_40 : i32
    %c5_i32 = arith.constant 5 : i32
    %59 = arith.addi %58, %c5_i32 : i32
    %60 = arith.index_cast %59 : i32 to index
    %61 = memref.load %arg2[%60] : memref<16xi32, #tpu.memory_space<smem>>
    %c0_i32_41 = arith.constant 0 : i32
    %62 = arith.maxsi %61, %c0_i32_41 : i32
    %c511_i32_42 = arith.constant 511 : i32
    %63 = arith.minsi %62, %c511_i32_42 : i32
    %c0_i32_43 = arith.constant 0 : i32
    %c0_i32_44 = arith.constant 0 : i32
    %64 = tpu.memref_slice %arg3[%63, %c0_i32_44] : memref<512x256xf32, #tpu.memory_space<vmem>> -> memref<1x256xf32, #tpu.memory_space<vmem>>
    %c0_i32_45 = arith.constant 0 : i32
    %c5_i32_46 = arith.constant 5 : i32
    %c0_i32_47 = arith.constant 0 : i32
    %65 = tpu.memref_slice %arg5[%c0_i32_45, %c5_i32_46, %c0_i32_47] : memref<1x8x256xf32, #tpu.memory_space<vmem>> -> memref<1x1x256xf32, #tpu.memory_space<vmem>>
    %66 = tpu.memref_squeeze %65 : memref<1x1x256xf32, #tpu.memory_space<vmem>> -> memref<1x256xf32, #tpu.memory_space<vmem>>
    %67 = tpu.memref_slice %arg6[%c0_i32_43] : memref<1x!tpu.dma_semaphore, #tpu.memory_space<semaphore_mem>> -> memref<1x!tpu.dma_semaphore, #tpu.memory_space<semaphore_mem>>
    %68 = tpu.memref_squeeze %67 : memref<1x!tpu.dma_semaphore, #tpu.memory_space<semaphore_mem>> -> memref<!tpu.dma_semaphore, #tpu.memory_space<semaphore_mem>>
    tpu.enqueue_dma source(%64 : memref<1x256xf32, #tpu.memory_space<vmem>>) target(%66 : memref<1x256xf32, #tpu.memory_space<vmem>>) target_semaphore(%68 : memref<!tpu.dma_semaphore, #tpu.memory_space<semaphore_mem>>)
    %c0_i32_48 = arith.constant 0 : i32
    %69 = arith.addi %2, %c0_i32_48 : i32
    %c6_i32 = arith.constant 6 : i32
    %70 = arith.addi %69, %c6_i32 : i32
    %71 = arith.index_cast %70 : i32 to index
    %72 = memref.load %arg2[%71] : memref<16xi32, #tpu.memory_space<smem>>
    %c0_i32_49 = arith.constant 0 : i32
    %73 = arith.maxsi %72, %c0_i32_49 : i32
    %c511_i32_50 = arith.constant 511 : i32
    %74 = arith.minsi %73, %c511_i32_50 : i32
    %c0_i32_51 = arith.constant 0 : i32
    %c0_i32_52 = arith.constant 0 : i32
    %75 = tpu.memref_slice %arg3[%74, %c0_i32_52] : memref<512x256xf32, #tpu.memory_space<vmem>> -> memref<1x256xf32, #tpu.memory_space<vmem>>
    %c0_i32_53 = arith.constant 0 : i32
    %c6_i32_54 = arith.constant 6 : i32
    %c0_i32_55 = arith.constant 0 : i32
    %76 = tpu.memref_slice %arg5[%c0_i32_53, %c6_i32_54, %c0_i32_55] : memref<1x8x256xf32, #tpu.memory_space<vmem>> -> memref<1x1x256xf32, #tpu.memory_space<vmem>>
    %77 = tpu.memref_squeeze %76 : memref<1x1x256xf32, #tpu.memory_space<vmem>> -> memref<1x256xf32, #tpu.memory_space<vmem>>
    %78 = tpu.memref_slice %arg6[%c0_i32_51] : memref<1x!tpu.dma_semaphore, #tpu.memory_space<semaphore_mem>> -> memref<1x!tpu.dma_semaphore, #tpu.memory_space<semaphore_mem>>
    %79 = tpu.memref_squeeze %78 : memref<1x!tpu.dma_semaphore, #tpu.memory_space<semaphore_mem>> -> memref<!tpu.dma_semaphore, #tpu.memory_space<semaphore_mem>>
    tpu.enqueue_dma source(%75 : memref<1x256xf32, #tpu.memory_space<vmem>>) target(%77 : memref<1x256xf32, #tpu.memory_space<vmem>>) target_semaphore(%79 : memref<!tpu.dma_semaphore, #tpu.memory_space<semaphore_mem>>)
    %c0_i32_56 = arith.constant 0 : i32
    %80 = arith.addi %2, %c0_i32_56 : i32
    %c7_i32 = arith.constant 7 : i32
    %81 = arith.addi %80, %c7_i32 : i32
    %82 = arith.index_cast %81 : i32 to index
    %83 = memref.load %arg2[%82] : memref<16xi32, #tpu.memory_space<smem>>
    %c0_i32_57 = arith.constant 0 : i32
    %84 = arith.maxsi %83, %c0_i32_57 : i32
    %c511_i32_58 = arith.constant 511 : i32
    %85 = arith.minsi %84, %c511_i32_58 : i32
    %c0_i32_59 = arith.constant 0 : i32
    %c0_i32_60 = arith.constant 0 : i32
    %86 = tpu.memref_slice %arg3[%85, %c0_i32_60] : memref<512x256xf32, #tpu.memory_space<vmem>> -> memref<1x256xf32, #tpu.memory_space<vmem>>
    %c0_i32_61 = arith.constant 0 : i32
    %c7_i32_62 = arith.constant 7 : i32
    %c0_i32_63 = arith.constant 0 : i32
    %87 = tpu.memref_slice %arg5[%c0_i32_61, %c7_i32_62, %c0_i32_63] : memref<1x8x256xf32, #tpu.memory_space<vmem>> -> memref<1x1x256xf32, #tpu.memory_space<vmem>>
    %88 = tpu.memref_squeeze %87 : memref<1x1x256xf32, #tpu.memory_space<vmem>> -> memref<1x256xf32, #tpu.memory_space<vmem>>
    %89 = tpu.memref_slice %arg6[%c0_i32_59] : memref<1x!tpu.dma_semaphore, #tpu.memory_space<semaphore_mem>> -> memref<1x!tpu.dma_semaphore, #tpu.memory_space<semaphore_mem>>
    %90 = tpu.memref_squeeze %89 : memref<1x!tpu.dma_semaphore, #tpu.memory_space<semaphore_mem>> -> memref<!tpu.dma_semaphore, #tpu.memory_space<semaphore_mem>>
    tpu.enqueue_dma source(%86 : memref<1x256xf32, #tpu.memory_space<vmem>>) target(%88 : memref<1x256xf32, #tpu.memory_space<vmem>>) target_semaphore(%90 : memref<!tpu.dma_semaphore, #tpu.memory_space<semaphore_mem>>)
    %c0_i32_64 = arith.constant 0 : i32
    %c1_i32_65 = arith.constant 1 : i32
    %91 = arith.addi %c0_i32_64, %c1_i32_65 : i32
    %c1_i32_66 = arith.constant 1 : i32
    %92 = arith.cmpi slt, %91, %c1_i32_66 : i32
    %93 = arith.extui %92 : i1 to i32
    %c0_i32_67 = arith.constant 0 : i32
    %94 = arith.cmpi ne, %93, %c0_i32_67 : i32
    scf.if %94 {
      %c1_i32_121 = arith.constant 1 : i32
      %166 = arith.addi %c0_i32_64, %c1_i32_121 : i32
      %c1_i32_122 = arith.constant 1 : i32
      %c0_i32_123 = arith.constant 0 : i32
      %167 = arith.cmpi eq, %c1_i32_122, %c0_i32_123 : i32
      %c1_i32_124 = arith.constant 1 : i32
      %168 = arith.select %167, %c1_i32_124, %c1_i32_122 : i32
      %169 = arith.remsi %166, %168 : i32
      %c0_i32_125 = arith.constant 0 : i32
      %170 = arith.cmpi ne, %169, %c0_i32_125 : i32
      %c0_i32_126 = arith.constant 0 : i32
      %171 = arith.cmpi slt, %169, %c0_i32_126 : i32
      %c0_i32_127 = arith.constant 0 : i32
      %172 = arith.cmpi slt, %168, %c0_i32_127 : i32
      %173 = arith.xori %171, %172 : i1
      %174 = arith.andi %173, %170 : i1
      %175 = arith.addi %169, %168 : i32
      %176 = arith.select %174, %175, %169 : i32
      %c8_i32_128 = arith.constant 8 : i32
      %177 = arith.muli %166, %c8_i32_128 : i32
      %178 = arith.addi %2, %177 : i32
      %c0_i32_129 = arith.constant 0 : i32
      %179 = arith.addi %178, %c0_i32_129 : i32
      %180 = arith.index_cast %179 : i32 to index
      %181 = memref.load %arg2[%180] : memref<16xi32, #tpu.memory_space<smem>>
      %c0_i32_130 = arith.constant 0 : i32
      %182 = arith.maxsi %181, %c0_i32_130 : i32
      %c511_i32_131 = arith.constant 511 : i32
      %183 = arith.minsi %182, %c511_i32_131 : i32
      %c0_i32_132 = arith.constant 0 : i32
      %184 = arith.addi %177, %c0_i32_132 : i32
      %c0_i32_133 = arith.constant 0 : i32
      %185 = tpu.memref_slice %arg3[%183, %c0_i32_133] : memref<512x256xf32, #tpu.memory_space<vmem>> -> memref<1x256xf32, #tpu.memory_space<vmem>>
      %c0_i32_134 = arith.constant 0 : i32
      %c0_i32_135 = arith.constant 0 : i32
      %186 = tpu.memref_slice %arg5[%c0_i32_134, %184, %c0_i32_135] : memref<1x8x256xf32, #tpu.memory_space<vmem>> -> memref<1x1x256xf32, #tpu.memory_space<vmem>>
      %187 = tpu.memref_squeeze %186 : memref<1x1x256xf32, #tpu.memory_space<vmem>> -> memref<1x256xf32, #tpu.memory_space<vmem>>
      %188 = tpu.memref_slice %arg6[%176] : memref<1x!tpu.dma_semaphore, #tpu.memory_space<semaphore_mem>> -> memref<1x!tpu.dma_semaphore, #tpu.memory_space<semaphore_mem>>
      %189 = tpu.memref_squeeze %188 : memref<1x!tpu.dma_semaphore, #tpu.memory_space<semaphore_mem>> -> memref<!tpu.dma_semaphore, #tpu.memory_space<semaphore_mem>>
      tpu.enqueue_dma source(%185 : memref<1x256xf32, #tpu.memory_space<vmem>>) target(%187 : memref<1x256xf32, #tpu.memory_space<vmem>>) target_semaphore(%189 : memref<!tpu.dma_semaphore, #tpu.memory_space<semaphore_mem>>)
      %190 = arith.addi %2, %177 : i32
      %c1_i32_136 = arith.constant 1 : i32
      %191 = arith.addi %190, %c1_i32_136 : i32
      %192 = arith.index_cast %191 : i32 to index
      %193 = memref.load %arg2[%192] : memref<16xi32, #tpu.memory_space<smem>>
      %c0_i32_137 = arith.constant 0 : i32
      %194 = arith.maxsi %193, %c0_i32_137 : i32
      %c511_i32_138 = arith.constant 511 : i32
      %195 = arith.minsi %194, %c511_i32_138 : i32
      %c1_i32_139 = arith.constant 1 : i32
      %196 = arith.addi %177, %c1_i32_139 : i32
      %c0_i32_140 = arith.constant 0 : i32
      %197 = tpu.memref_slice %arg3[%195, %c0_i32_140] : memref<512x256xf32, #tpu.memory_space<vmem>> -> memref<1x256xf32, #tpu.memory_space<vmem>>
      %c0_i32_141 = arith.constant 0 : i32
      %c0_i32_142 = arith.constant 0 : i32
      %198 = tpu.memref_slice %arg5[%c0_i32_141, %196, %c0_i32_142] : memref<1x8x256xf32, #tpu.memory_space<vmem>> -> memref<1x1x256xf32, #tpu.memory_space<vmem>>
      %199 = tpu.memref_squeeze %198 : memref<1x1x256xf32, #tpu.memory_space<vmem>> -> memref<1x256xf32, #tpu.memory_space<vmem>>
      %200 = tpu.memref_slice %arg6[%176] : memref<1x!tpu.dma_semaphore, #tpu.memory_space<semaphore_mem>> -> memref<1x!tpu.dma_semaphore, #tpu.memory_space<semaphore_mem>>
      %201 = tpu.memref_squeeze %200 : memref<1x!tpu.dma_semaphore, #tpu.memory_space<semaphore_mem>> -> memref<!tpu.dma_semaphore, #tpu.memory_space<semaphore_mem>>
      tpu.enqueue_dma source(%197 : memref<1x256xf32, #tpu.memory_space<vmem>>) target(%199 : memref<1x256xf32, #tpu.memory_space<vmem>>) target_semaphore(%201 : memref<!tpu.dma_semaphore, #tpu.memory_space<semaphore_mem>>)
      %202 = arith.addi %2, %177 : i32
      %c2_i32_143 = arith.constant 2 : i32
      %203 = arith.addi %202, %c2_i32_143 : i32
      %204 = arith.index_cast %203 : i32 to index
      %205 = memref.load %arg2[%204] : memref<16xi32, #tpu.memory_space<smem>>
      %c0_i32_144 = arith.constant 0 : i32
      %206 = arith.maxsi %205, %c0_i32_144 : i32
      %c511_i32_145 = arith.constant 511 : i32
      %207 = arith.minsi %206, %c511_i32_145 : i32
      %c2_i32_146 = arith.constant 2 : i32
      %208 = arith.addi %177, %c2_i32_146 : i32
      %c0_i32_147 = arith.constant 0 : i32
      %209 = tpu.memref_slice %arg3[%207, %c0_i32_147] : memref<512x256xf32, #tpu.memory_space<vmem>> -> memref<1x256xf32, #tpu.memory_space<vmem>>
      %c0_i32_148 = arith.constant 0 : i32
      %c0_i32_149 = arith.constant 0 : i32
      %210 = tpu.memref_slice %arg5[%c0_i32_148, %208, %c0_i32_149] : memref<1x8x256xf32, #tpu.memory_space<vmem>> -> memref<1x1x256xf32, #tpu.memory_space<vmem>>
      %211 = tpu.memref_squeeze %210 : memref<1x1x256xf32, #tpu.memory_space<vmem>> -> memref<1x256xf32, #tpu.memory_space<vmem>>
      %212 = tpu.memref_slice %arg6[%176] : memref<1x!tpu.dma_semaphore, #tpu.memory_space<semaphore_mem>> -> memref<1x!tpu.dma_semaphore, #tpu.memory_space<semaphore_mem>>
      %213 = tpu.memref_squeeze %212 : memref<1x!tpu.dma_semaphore, #tpu.memory_space<semaphore_mem>> -> memref<!tpu.dma_semaphore, #tpu.memory_space<semaphore_mem>>
      tpu.enqueue_dma source(%209 : memref<1x256xf32, #tpu.memory_space<vmem>>) target(%211 : memref<1x256xf32, #tpu.memory_space<vmem>>) target_semaphore(%213 : memref<!tpu.dma_semaphore, #tpu.memory_space<semaphore_mem>>)
      %214 = arith.addi %2, %177 : i32
      %c3_i32_150 = arith.constant 3 : i32
      %215 = arith.addi %214, %c3_i32_150 : i32
      %216 = arith.index_cast %215 : i32 to index
      %217 = memref.load %arg2[%216] : memref<16xi32, #tpu.memory_space<smem>>
      %c0_i32_151 = arith.constant 0 : i32
      %218 = arith.maxsi %217, %c0_i32_151 : i32
      %c511_i32_152 = arith.constant 511 : i32
      %219 = arith.minsi %218, %c511_i32_152 : i32
      %c3_i32_153 = arith.constant 3 : i32
      %220 = arith.addi %177, %c3_i32_153 : i32
      %c0_i32_154 = arith.constant 0 : i32
      %221 = tpu.memref_slice %arg3[%219, %c0_i32_154] : memref<512x256xf32, #tpu.memory_space<vmem>> -> memref<1x256xf32, #tpu.memory_space<vmem>>
      %c0_i32_155 = arith.constant 0 : i32
      %c0_i32_156 = arith.constant 0 : i32
      %222 = tpu.memref_slice %arg5[%c0_i32_155, %220, %c0_i32_156] : memref<1x8x256xf32, #tpu.memory_space<vmem>> -> memref<1x1x256xf32, #tpu.memory_space<vmem>>
      %223 = tpu.memref_squeeze %222 : memref<1x1x256xf32, #tpu.memory_space<vmem>> -> memref<1x256xf32, #tpu.memory_space<vmem>>
      %224 = tpu.memref_slice %arg6[%176] : memref<1x!tpu.dma_semaphore, #tpu.memory_space<semaphore_mem>> -> memref<1x!tpu.dma_semaphore, #tpu.memory_space<semaphore_mem>>
      %225 = tpu.memref_squeeze %224 : memref<1x!tpu.dma_semaphore, #tpu.memory_space<semaphore_mem>> -> memref<!tpu.dma_semaphore, #tpu.memory_space<semaphore_mem>>
      tpu.enqueue_dma source(%221 : memref<1x256xf32, #tpu.memory_space<vmem>>) target(%223 : memref<1x256xf32, #tpu.memory_space<vmem>>) target_semaphore(%225 : memref<!tpu.dma_semaphore, #tpu.memory_space<semaphore_mem>>)
      %226 = arith.addi %2, %177 : i32
      %c4_i32_157 = arith.constant 4 : i32
      %227 = arith.addi %226, %c4_i32_157 : i32
      %228 = arith.index_cast %227 : i32 to index
      %229 = memref.load %arg2[%228] : memref<16xi32, #tpu.memory_space<smem>>
      %c0_i32_158 = arith.constant 0 : i32
      %230 = arith.maxsi %229, %c0_i32_158 : i32
      %c511_i32_159 = arith.constant 511 : i32
      %231 = arith.minsi %230, %c511_i32_159 : i32
      %c4_i32_160 = arith.constant 4 : i32
      %232 = arith.addi %177, %c4_i32_160 : i32
      %c0_i32_161 = arith.constant 0 : i32
      %233 = tpu.memref_slice %arg3[%231, %c0_i32_161] : memref<512x256xf32, #tpu.memory_space<vmem>> -> memref<1x256xf32, #tpu.memory_space<vmem>>
      %c0_i32_162 = arith.constant 0 : i32
      %c0_i32_163 = arith.constant 0 : i32
      %234 = tpu.memref_slice %arg5[%c0_i32_162, %232, %c0_i32_163] : memref<1x8x256xf32, #tpu.memory_space<vmem>> -> memref<1x1x256xf32, #tpu.memory_space<vmem>>
      %235 = tpu.memref_squeeze %234 : memref<1x1x256xf32, #tpu.memory_space<vmem>> -> memref<1x256xf32, #tpu.memory_space<vmem>>
      %236 = tpu.memref_slice %arg6[%176] : memref<1x!tpu.dma_semaphore, #tpu.memory_space<semaphore_mem>> -> memref<1x!tpu.dma_semaphore, #tpu.memory_space<semaphore_mem>>
      %237 = tpu.memref_squeeze %236 : memref<1x!tpu.dma_semaphore, #tpu.memory_space<semaphore_mem>> -> memref<!tpu.dma_semaphore, #tpu.memory_space<semaphore_mem>>
      tpu.enqueue_dma source(%233 : memref<1x256xf32, #tpu.memory_space<vmem>>) target(%235 : memref<1x256xf32, #tpu.memory_space<vmem>>) target_semaphore(%237 : memref<!tpu.dma_semaphore, #tpu.memory_space<semaphore_mem>>)
      %238 = arith.addi %2, %177 : i32
      %c5_i32_164 = arith.constant 5 : i32
      %239 = arith.addi %238, %c5_i32_164 : i32
      %240 = arith.index_cast %239 : i32 to index
      %241 = memref.load %arg2[%240] : memref<16xi32, #tpu.memory_space<smem>>
      %c0_i32_165 = arith.constant 0 : i32
      %242 = arith.maxsi %241, %c0_i32_165 : i32
      %c511_i32_166 = arith.constant 511 : i32
      %243 = arith.minsi %242, %c511_i32_166 : i32
      %c5_i32_167 = arith.constant 5 : i32
      %244 = arith.addi %177, %c5_i32_167 : i32
      %c0_i32_168 = arith.constant 0 : i32
      %245 = tpu.memref_slice %arg3[%243, %c0_i32_168] : memref<512x256xf32, #tpu.memory_space<vmem>> -> memref<1x256xf32, #tpu.memory_space<vmem>>
      %c0_i32_169 = arith.constant 0 : i32
      %c0_i32_170 = arith.constant 0 : i32
      %246 = tpu.memref_slice %arg5[%c0_i32_169, %244, %c0_i32_170] : memref<1x8x256xf32, #tpu.memory_space<vmem>> -> memref<1x1x256xf32, #tpu.memory_space<vmem>>
      %247 = tpu.memref_squeeze %246 : memref<1x1x256xf32, #tpu.memory_space<vmem>> -> memref<1x256xf32, #tpu.memory_space<vmem>>
      %248 = tpu.memref_slice %arg6[%176] : memref<1x!tpu.dma_semaphore, #tpu.memory_space<semaphore_mem>> -> memref<1x!tpu.dma_semaphore, #tpu.memory_space<semaphore_mem>>
      %249 = tpu.memref_squeeze %248 : memref<1x!tpu.dma_semaphore, #tpu.memory_space<semaphore_mem>> -> memref<!tpu.dma_semaphore, #tpu.memory_space<semaphore_mem>>
      tpu.enqueue_dma source(%245 : memref<1x256xf32, #tpu.memory_space<vmem>>) target(%247 : memref<1x256xf32, #tpu.memory_space<vmem>>) target_semaphore(%249 : memref<!tpu.dma_semaphore, #tpu.memory_space<semaphore_mem>>)
      %250 = arith.addi %2, %177 : i32
      %c6_i32_171 = arith.constant 6 : i32
      %251 = arith.addi %250, %c6_i32_171 : i32
      %252 = arith.index_cast %251 : i32 to index
      %253 = memref.load %arg2[%252] : memref<16xi32, #tpu.memory_space<smem>>
      %c0_i32_172 = arith.constant 0 : i32
      %254 = arith.maxsi %253, %c0_i32_172 : i32
      %c511_i32_173 = arith.constant 511 : i32
      %255 = arith.minsi %254, %c511_i32_173 : i32
      %c6_i32_174 = arith.constant 6 : i32
      %256 = arith.addi %177, %c6_i32_174 : i32
      %c0_i32_175 = arith.constant 0 : i32
      %257 = tpu.memref_slice %arg3[%255, %c0_i32_175] : memref<512x256xf32, #tpu.memory_space<vmem>> -> memref<1x256xf32, #tpu.memory_space<vmem>>
      %c0_i32_176 = arith.constant 0 : i32
      %c0_i32_177 = arith.constant 0 : i32
      %258 = tpu.memref_slice %arg5[%c0_i32_176, %256, %c0_i32_177] : memref<1x8x256xf32, #tpu.memory_space<vmem>> -> memref<1x1x256xf32, #tpu.memory_space<vmem>>
      %259 = tpu.memref_squeeze %258 : memref<1x1x256xf32, #tpu.memory_space<vmem>> -> memref<1x256xf32, #tpu.memory_space<vmem>>
      %260 = tpu.memref_slice %arg6[%176] : memref<1x!tpu.dma_semaphore, #tpu.memory_space<semaphore_mem>> -> memref<1x!tpu.dma_semaphore, #tpu.memory_space<semaphore_mem>>
      %261 = tpu.memref_squeeze %260 : memref<1x!tpu.dma_semaphore, #tpu.memory_space<semaphore_mem>> -> memref<!tpu.dma_semaphore, #tpu.memory_space<semaphore_mem>>
      tpu.enqueue_dma source(%257 : memref<1x256xf32, #tpu.memory_space<vmem>>) target(%259 : memref<1x256xf32, #tpu.memory_space<vmem>>) target_semaphore(%261 : memref<!tpu.dma_semaphore, #tpu.memory_space<semaphore_mem>>)
      %262 = arith.addi %2, %177 : i32
      %c7_i32_178 = arith.constant 7 : i32
      %263 = arith.addi %262, %c7_i32_178 : i32
      %264 = arith.index_cast %263 : i32 to index
      %265 = memref.load %arg2[%264] : memref<16xi32, #tpu.memory_space<smem>>
      %c0_i32_179 = arith.constant 0 : i32
      %266 = arith.maxsi %265, %c0_i32_179 : i32
      %c511_i32_180 = arith.constant 511 : i32
      %267 = arith.minsi %266, %c511_i32_180 : i32
      %c7_i32_181 = arith.constant 7 : i32
      %268 = arith.addi %177, %c7_i32_181 : i32
      %c0_i32_182 = arith.constant 0 : i32
      %269 = tpu.memref_slice %arg3[%267, %c0_i32_182] : memref<512x256xf32, #tpu.memory_space<vmem>> -> memref<1x256xf32, #tpu.memory_space<vmem>>
      %c0_i32_183 = arith.constant 0 : i32
      %c0_i32_184 = arith.constant 0 : i32
      %270 = tpu.memref_slice %arg5[%c0_i32_183, %268, %c0_i32_184] : memref<1x8x256xf32, #tpu.memory_space<vmem>> -> memref<1x1x256xf32, #tpu.memory_space<vmem>>
      %271 = tpu.memref_squeeze %270 : memref<1x1x256xf32, #tpu.memory_space<vmem>> -> memref<1x256xf32, #tpu.memory_space<vmem>>
      %272 = tpu.memref_slice %arg6[%176] : memref<1x!tpu.dma_semaphore, #tpu.memory_space<semaphore_mem>> -> memref<1x!tpu.dma_semaphore, #tpu.memory_space<semaphore_mem>>
      %273 = tpu.memref_squeeze %272 : memref<1x!tpu.dma_semaphore, #tpu.memory_space<semaphore_mem>> -> memref<!tpu.dma_semaphore, #tpu.memory_space<semaphore_mem>>
      tpu.enqueue_dma source(%269 : memref<1x256xf32, #tpu.memory_space<vmem>>) target(%271 : memref<1x256xf32, #tpu.memory_space<vmem>>) target_semaphore(%273 : memref<!tpu.dma_semaphore, #tpu.memory_space<semaphore_mem>>)
    } else {
    }
    %c1_i32_68 = arith.constant 1 : i32
    %c0_i32_69 = arith.constant 0 : i32
    %95 = arith.cmpi eq, %c1_i32_68, %c0_i32_69 : i32
    %c1_i32_70 = arith.constant 1 : i32
    %96 = arith.select %95, %c1_i32_70, %c1_i32_68 : i32
    %97 = arith.remsi %c0_i32_64, %96 : i32
    %c0_i32_71 = arith.constant 0 : i32
    %98 = arith.cmpi ne, %97, %c0_i32_71 : i32
    %c0_i32_72 = arith.constant 0 : i32
    %99 = arith.cmpi slt, %97, %c0_i32_72 : i32
    %c0_i32_73 = arith.constant 0 : i32
    %100 = arith.cmpi slt, %96, %c0_i32_73 : i32
    %101 = arith.xori %99, %100 : i1
    %102 = arith.andi %101, %98 : i1
    %103 = arith.addi %97, %96 : i32
    %104 = arith.select %102, %103, %97 : i32
    %c8_i32_74 = arith.constant 8 : i32
    %105 = arith.muli %c0_i32_64, %c8_i32_74 : i32
    %c0_i32_75 = arith.constant 0 : i32
    %106 = arith.addi %105, %c0_i32_75 : i32
    %c0_i32_76 = arith.constant 0 : i32
    %c0_i32_77 = arith.constant 0 : i32
    %107 = tpu.memref_slice %arg3[%c0_i32_76, %c0_i32_77] : memref<512x256xf32, #tpu.memory_space<vmem>> -> memref<1x256xf32, #tpu.memory_space<vmem>>
    %c0_i32_78 = arith.constant 0 : i32
    %c0_i32_79 = arith.constant 0 : i32
    %108 = tpu.memref_slice %arg5[%c0_i32_78, %106, %c0_i32_79] : memref<1x8x256xf32, #tpu.memory_space<vmem>> -> memref<1x1x256xf32, #tpu.memory_space<vmem>>
    %109 = tpu.memref_squeeze %108 : memref<1x1x256xf32, #tpu.memory_space<vmem>> -> memref<1x256xf32, #tpu.memory_space<vmem>>
    %110 = tpu.memref_slice %arg6[%104] : memref<1x!tpu.dma_semaphore, #tpu.memory_space<semaphore_mem>> -> memref<1x!tpu.dma_semaphore, #tpu.memory_space<semaphore_mem>>
    %111 = tpu.memref_squeeze %110 : memref<1x!tpu.dma_semaphore, #tpu.memory_space<semaphore_mem>> -> memref<!tpu.dma_semaphore, #tpu.memory_space<semaphore_mem>>
    tpu.wait_dma2 semaphore(%111 : memref<!tpu.dma_semaphore, #tpu.memory_space<semaphore_mem>>) src(%107 : memref<1x256xf32, #tpu.memory_space<vmem>>) dst(%109 : memref<1x256xf32, #tpu.memory_space<vmem>>)
    %c1_i32_80 = arith.constant 1 : i32
    %112 = arith.addi %105, %c1_i32_80 : i32
    %c0_i32_81 = arith.constant 0 : i32
    %c0_i32_82 = arith.constant 0 : i32
    %113 = tpu.memref_slice %arg3[%c0_i32_81, %c0_i32_82] : memref<512x256xf32, #tpu.memory_space<vmem>> -> memref<1x256xf32, #tpu.memory_space<vmem>>
    %c0_i32_83 = arith.constant 0 : i32
    %c0_i32_84 = arith.constant 0 : i32
    %114 = tpu.memref_slice %arg5[%c0_i32_83, %112, %c0_i32_84] : memref<1x8x256xf32, #tpu.memory_space<vmem>> -> memref<1x1x256xf32, #tpu.memory_space<vmem>>
    %115 = tpu.memref_squeeze %114 : memref<1x1x256xf32, #tpu.memory_space<vmem>> -> memref<1x256xf32, #tpu.memory_space<vmem>>
    %116 = tpu.memref_slice %arg6[%104] : memref<1x!tpu.dma_semaphore, #tpu.memory_space<semaphore_mem>> -> memref<1x!tpu.dma_semaphore, #tpu.memory_space<semaphore_mem>>
    %117 = tpu.memref_squeeze %116 : memref<1x!tpu.dma_semaphore, #tpu.memory_space<semaphore_mem>> -> memref<!tpu.dma_semaphore, #tpu.memory_space<semaphore_mem>>
    tpu.wait_dma2 semaphore(%117 : memref<!tpu.dma_semaphore, #tpu.memory_space<semaphore_mem>>) src(%113 : memref<1x256xf32, #tpu.memory_space<vmem>>) dst(%115 : memref<1x256xf32, #tpu.memory_space<vmem>>)
    %c2_i32_85 = arith.constant 2 : i32
    %118 = arith.addi %105, %c2_i32_85 : i32
    %c0_i32_86 = arith.constant 0 : i32
    %c0_i32_87 = arith.constant 0 : i32
    %119 = tpu.memref_slice %arg3[%c0_i32_86, %c0_i32_87] : memref<512x256xf32, #tpu.memory_space<vmem>> -> memref<1x256xf32, #tpu.memory_space<vmem>>
    %c0_i32_88 = arith.constant 0 : i32
    %c0_i32_89 = arith.constant 0 : i32
    %120 = tpu.memref_slice %arg5[%c0_i32_88, %118, %c0_i32_89] : memref<1x8x256xf32, #tpu.memory_space<vmem>> -> memref<1x1x256xf32, #tpu.memory_space<vmem>>
    %121 = tpu.memref_squeeze %120 : memref<1x1x256xf32, #tpu.memory_space<vmem>> -> memref<1x256xf32, #tpu.memory_space<vmem>>
    %122 = tpu.memref_slice %arg6[%104] : memref<1x!tpu.dma_semaphore, #tpu.memory_space<semaphore_mem>> -> memref<1x!tpu.dma_semaphore, #tpu.memory_space<semaphore_mem>>
    %123 = tpu.memref_squeeze %122 : memref<1x!tpu.dma_semaphore, #tpu.memory_space<semaphore_mem>> -> memref<!tpu.dma_semaphore, #tpu.memory_space<semaphore_mem>>
    tpu.wait_dma2 semaphore(%123 : memref<!tpu.dma_semaphore, #tpu.memory_space<semaphore_mem>>) src(%119 : memref<1x256xf32, #tpu.memory_space<vmem>>) dst(%121 : memref<1x256xf32, #tpu.memory_space<vmem>>)
    %c3_i32_90 = arith.constant 3 : i32
    %124 = arith.addi %105, %c3_i32_90 : i32
    %c0_i32_91 = arith.constant 0 : i32
    %c0_i32_92 = arith.constant 0 : i32
    %125 = tpu.memref_slice %arg3[%c0_i32_91, %c0_i32_92] : memref<512x256xf32, #tpu.memory_space<vmem>> -> memref<1x256xf32, #tpu.memory_space<vmem>>
    %c0_i32_93 = arith.constant 0 : i32
    %c0_i32_94 = arith.constant 0 : i32
    %126 = tpu.memref_slice %arg5[%c0_i32_93, %124, %c0_i32_94] : memref<1x8x256xf32, #tpu.memory_space<vmem>> -> memref<1x1x256xf32, #tpu.memory_space<vmem>>
    %127 = tpu.memref_squeeze %126 : memref<1x1x256xf32, #tpu.memory_space<vmem>> -> memref<1x256xf32, #tpu.memory_space<vmem>>
    %128 = tpu.memref_slice %arg6[%104] : memref<1x!tpu.dma_semaphore, #tpu.memory_space<semaphore_mem>> -> memref<1x!tpu.dma_semaphore, #tpu.memory_space<semaphore_mem>>
    %129 = tpu.memref_squeeze %128 : memref<1x!tpu.dma_semaphore, #tpu.memory_space<semaphore_mem>> -> memref<!tpu.dma_semaphore, #tpu.memory_space<semaphore_mem>>
    tpu.wait_dma2 semaphore(%129 : memref<!tpu.dma_semaphore, #tpu.memory_space<semaphore_mem>>) src(%125 : memref<1x256xf32, #tpu.memory_space<vmem>>) dst(%127 : memref<1x256xf32, #tpu.memory_space<vmem>>)
    %c4_i32_95 = arith.constant 4 : i32
    %130 = arith.addi %105, %c4_i32_95 : i32
    %c0_i32_96 = arith.constant 0 : i32
    %c0_i32_97 = arith.constant 0 : i32
    %131 = tpu.memref_slice %arg3[%c0_i32_96, %c0_i32_97] : memref<512x256xf32, #tpu.memory_space<vmem>> -> memref<1x256xf32, #tpu.memory_space<vmem>>
    %c0_i32_98 = arith.constant 0 : i32
    %c0_i32_99 = arith.constant 0 : i32
    %132 = tpu.memref_slice %arg5[%c0_i32_98, %130, %c0_i32_99] : memref<1x8x256xf32, #tpu.memory_space<vmem>> -> memref<1x1x256xf32, #tpu.memory_space<vmem>>
    %133 = tpu.memref_squeeze %132 : memref<1x1x256xf32, #tpu.memory_space<vmem>> -> memref<1x256xf32, #tpu.memory_space<vmem>>
    %134 = tpu.memref_slice %arg6[%104] : memref<1x!tpu.dma_semaphore, #tpu.memory_space<semaphore_mem>> -> memref<1x!tpu.dma_semaphore, #tpu.memory_space<semaphore_mem>>
    %135 = tpu.memref_squeeze %134 : memref<1x!tpu.dma_semaphore, #tpu.memory_space<semaphore_mem>> -> memref<!tpu.dma_semaphore, #tpu.memory_space<semaphore_mem>>
    tpu.wait_dma2 semaphore(%135 : memref<!tpu.dma_semaphore, #tpu.memory_space<semaphore_mem>>) src(%131 : memref<1x256xf32, #tpu.memory_space<vmem>>) dst(%133 : memref<1x256xf32, #tpu.memory_space<vmem>>)
    %c5_i32_100 = arith.constant 5 : i32
    %136 = arith.addi %105, %c5_i32_100 : i32
    %c0_i32_101 = arith.constant 0 : i32
    %c0_i32_102 = arith.constant 0 : i32
    %137 = tpu.memref_slice %arg3[%c0_i32_101, %c0_i32_102] : memref<512x256xf32, #tpu.memory_space<vmem>> -> memref<1x256xf32, #tpu.memory_space<vmem>>
    %c0_i32_103 = arith.constant 0 : i32
    %c0_i32_104 = arith.constant 0 : i32
    %138 = tpu.memref_slice %arg5[%c0_i32_103, %136, %c0_i32_104] : memref<1x8x256xf32, #tpu.memory_space<vmem>> -> memref<1x1x256xf32, #tpu.memory_space<vmem>>
    %139 = tpu.memref_squeeze %138 : memref<1x1x256xf32, #tpu.memory_space<vmem>> -> memref<1x256xf32, #tpu.memory_space<vmem>>
    %140 = tpu.memref_slice %arg6[%104] : memref<1x!tpu.dma_semaphore, #tpu.memory_space<semaphore_mem>> -> memref<1x!tpu.dma_semaphore, #tpu.memory_space<semaphore_mem>>
    %141 = tpu.memref_squeeze %140 : memref<1x!tpu.dma_semaphore, #tpu.memory_space<semaphore_mem>> -> memref<!tpu.dma_semaphore, #tpu.memory_space<semaphore_mem>>
    tpu.wait_dma2 semaphore(%141 : memref<!tpu.dma_semaphore, #tpu.memory_space<semaphore_mem>>) src(%137 : memref<1x256xf32, #tpu.memory_space<vmem>>) dst(%139 : memref<1x256xf32, #tpu.memory_space<vmem>>)
    %c6_i32_105 = arith.constant 6 : i32
    %142 = arith.addi %105, %c6_i32_105 : i32
    %c0_i32_106 = arith.constant 0 : i32
    %c0_i32_107 = arith.constant 0 : i32
    %143 = tpu.memref_slice %arg3[%c0_i32_106, %c0_i32_107] : memref<512x256xf32, #tpu.memory_space<vmem>> -> memref<1x256xf32, #tpu.memory_space<vmem>>
    %c0_i32_108 = arith.constant 0 : i32
    %c0_i32_109 = arith.constant 0 : i32
    %144 = tpu.memref_slice %arg5[%c0_i32_108, %142, %c0_i32_109] : memref<1x8x256xf32, #tpu.memory_space<vmem>> -> memref<1x1x256xf32, #tpu.memory_space<vmem>>
    %145 = tpu.memref_squeeze %144 : memref<1x1x256xf32, #tpu.memory_space<vmem>> -> memref<1x256xf32, #tpu.memory_space<vmem>>
    %146 = tpu.memref_slice %arg6[%104] : memref<1x!tpu.dma_semaphore, #tpu.memory_space<semaphore_mem>> -> memref<1x!tpu.dma_semaphore, #tpu.memory_space<semaphore_mem>>
    %147 = tpu.memref_squeeze %146 : memref<1x!tpu.dma_semaphore, #tpu.memory_space<semaphore_mem>> -> memref<!tpu.dma_semaphore, #tpu.memory_space<semaphore_mem>>
    tpu.wait_dma2 semaphore(%147 : memref<!tpu.dma_semaphore, #tpu.memory_space<semaphore_mem>>) src(%143 : memref<1x256xf32, #tpu.memory_space<vmem>>) dst(%145 : memref<1x256xf32, #tpu.memory_space<vmem>>)
    %c7_i32_110 = arith.constant 7 : i32
    %148 = arith.addi %105, %c7_i32_110 : i32
    %c0_i32_111 = arith.constant 0 : i32
    %c0_i32_112 = arith.constant 0 : i32
    %149 = tpu.memref_slice %arg3[%c0_i32_111, %c0_i32_112] : memref<512x256xf32, #tpu.memory_space<vmem>> -> memref<1x256xf32, #tpu.memory_space<vmem>>
    %c0_i32_113 = arith.constant 0 : i32
    %c0_i32_114 = arith.constant 0 : i32
    %150 = tpu.memref_slice %arg5[%c0_i32_113, %148, %c0_i32_114] : memref<1x8x256xf32, #tpu.memory_space<vmem>> -> memref<1x1x256xf32, #tpu.memory_space<vmem>>
    %151 = tpu.memref_squeeze %150 : memref<1x1x256xf32, #tpu.memory_space<vmem>> -> memref<1x256xf32, #tpu.memory_space<vmem>>
    %152 = tpu.memref_slice %arg6[%104] : memref<1x!tpu.dma_semaphore, #tpu.memory_space<semaphore_mem>> -> memref<1x!tpu.dma_semaphore, #tpu.memory_space<semaphore_mem>>
    %153 = tpu.memref_squeeze %152 : memref<1x!tpu.dma_semaphore, #tpu.memory_space<semaphore_mem>> -> memref<!tpu.dma_semaphore, #tpu.memory_space<semaphore_mem>>
    tpu.wait_dma2 semaphore(%153 : memref<!tpu.dma_semaphore, #tpu.memory_space<semaphore_mem>>) src(%149 : memref<1x256xf32, #tpu.memory_space<vmem>>) dst(%151 : memref<1x256xf32, #tpu.memory_space<vmem>>)
    %c8_i32_115 = arith.constant 8 : i32
    %154 = arith.muli %c0_i32_64, %c8_i32_115 : i32
    %155 = tpu.assume_multiple %154, 8 : i32
    %c0 = arith.constant 0 : index
    %156 = arith.index_cast %155 : i32 to index
    %c0_116 = arith.constant 0 : index
    %157 = vector.load %arg5[%c0, %156, %c0_116] : memref<1x8x256xf32, #tpu.memory_space<vmem>>, vector<1x8x256xf32>
    %158 = vector.shape_cast %157 : vector<1x8x256xf32> to vector<8x256xf32>
    %159 = arith.index_cast %155 : i32 to index
    %c0_117 = arith.constant 0 : index
    %160 = vector.load %arg4[%159, %c0_117] : memref<8x256xf32, #tpu.memory_space<vmem>>, vector<8x256xf32>
    %161 = arith.addf %158, %160 : vector<8x256xf32>
    %c0_118 = arith.constant 0 : index
    %162 = arith.index_cast %155 : i32 to index
    %c0_119 = arith.constant 0 : index
    %163 = vector.load %arg5[%c0_118, %162, %c0_119] : memref<1x8x256xf32, #tpu.memory_space<vmem>>, vector<1x8x256xf32>
    %164 = vector.shape_cast %163 : vector<1x8x256xf32> to vector<8x256xf32>
    %165 = vector.shape_cast %161 : vector<8x256xf32> to vector<1x8x256xf32>
    tpu.vector_store %arg5[%c0_118, %162, %c0_119], %165 {strides = array<i32>} : memref<1x8x256xf32, #tpu.memory_space<vmem>>, vector<1x8x256xf32>,
    %c1_i32_120 = arith.constant 1 : i32
    return
  }
  func.func @transform_0(%arg0: i32, %arg1: i32, %arg2: memref<16xi32, #tpu.memory_space<smem>>) -> (i32, i32) {
    %c0_i32 = arith.constant 0 : i32
    %c0_i32_0 = arith.constant 0 : i32
    %c0_i32_1 = arith.constant 0 : i32
    return %c0_i32, %c0_i32_0 : i32, i32
  }
  func.func @transform_1(%arg0: i32, %arg1: i32, %arg2: memref<16xi32, #tpu.memory_space<smem>>) -> (i32, i32) {
    %c0_i32 = arith.constant 0 : i32
    %c0_i32_0 = arith.constant 0 : i32
    return %arg0, %c0_i32 : i32, i32
  }
  func.func @transform_2(%arg0: i32, %arg1: i32, %arg2: memref<16xi32, #tpu.memory_space<smem>>) -> (i32, i32, i32) {
    %c0_i32 = arith.constant 0 : i32
    %c0_i32_0 = arith.constant 0 : i32
    return %arg1, %arg0, %c0_i32 : i32, i32, i32
  }
}

</mosaic_0001>

<llo_original>
// kernel: embedding_forward.1
$region0: #{embedding_forward.1}
  #allocation0 [shape = 'u32[]', space=smem, size = 0x4, offset = 0x4, fixed_abs, tag = 'smem constant byte address 0x4 - core index']
  #allocation1 [shape = 'u32[144,128]{1,0:T(1,128)}', space=vmem, size = 0x12000, scoped, tag = 'internal scratch']
  #allocation2 [shape = 's32[1]{0}', space=sflag, size = 0x4, scoped, tag = 'scratch operand']
  #allocation3 [shape = 's32[1]{0}', space=sflag, size = 0x4, scoped, tag = 'scoped memory for embedding_forward.1']
  #allocation4 [shape = 'u8[512]{0}', space=smem, size = 0x200, scoped, tag = 'prefetched SMEM operand 0']
  #allocation9 [shape = 's32[]', space=sflag, size = 0x4, offset = 0, fixed_abs, tag = 'sflag constant byte address 0x0 - dummy sync flag']
  #allocation10 [shape = 's32[]', space=sflag, size = 0x4, offset = 0, fixed_abs, tag = 'sflag constant byte address 0x0 - dummy sync flag']
  #allocation11 [shape = 's32[]', space=sflag, size = 0x4, offset = 0, fixed_abs, tag = 'sflag constant byte address 0x0 - dummy sync flag']
  #allocation12 [shape = 's32[]', space=sflag, size = 0x4, offset = 0, fixed_abs, tag = 'sflag constant byte address 0x0 - dummy sync flag']
  #allocation13 [shape = 's32[]', space=sflag, size = 0x4, offset = 0, fixed_abs, tag = 'sflag constant byte address 0x0 - dummy sync flag']
  #allocation14 [shape = 's32[]', space=sflag, size = 0x4, offset = 0, fixed_abs, tag = 'sflag constant byte address 0x0 - dummy sync flag']
  #allocation15 [shape = 's32[]', space=sflag, size = 0x4, offset = 0, fixed_abs, tag = 'sflag constant byte address 0x0 - dummy sync flag']
  #allocation16 [shape = 's32[]', space=sflag, size = 0x4, offset = 0, fixed_abs, tag = 'sflag constant byte address 0x0 - dummy sync flag']
  %s0 = inlined_call_operand.vmem [shape: s32[16], index: 0, kind: input, shape index: {}]
  %s1 = inlined_call_operand.hbm [shape: f32[512,256], index: 1, kind: input, shape index: {}]
  %s2 = inlined_call_operand.vmem [shape: f32[8,256], index: 2, kind: input, shape index: {}]
  %s3 = inlined_call_operand.hbm [shape: f32[2,8,256], index: 3, kind: output, shape index: {}]
  %s4 = sld [smem:[#allocation0]]
  $region285: #{embedding_forward.1} parent=0
    _
  %s6 = ssub.s32 1, %s4
  %s7 = scalar_select 0, %s6, %s4
  %s8 = sshll.u32 %s0, 4
  %s9 = int_to_ptr.vmem [resolvable:$true] %s8
  %11 = dma.vmem_to_smem %s9, 16, [#allocation4], [#allocation3]
  %12 = dma.done [#allocation3], 16
  %13 = sfence
  $region1: #{embedding_forward.1} parent=0
    #allocation5 [shape = 'u8[524288]{0}', space=vmem, size = 0x80000, scoped, tag = 'input window, operand 1, single buffered']
    #allocation6 [shape = 's32[2]{0}', space=sflag, size = 0x8, scoped, tag = 'scoped memory for embedding_forward.1']
    #allocation7 [shape = 's32[2]{0}', space=sflag, size = 0x8, scoped, tag = 'scoped memory for embedding_forward.1']
    #allocation8 [shape = 'u8[16384]{0}', space=vmem, size = 0x4000, scoped, tag = 'output window, operand 0']
    %14 = vsyncpa [#allocation6], 0
    %15 = vsyncpa [#allocation7], 0
    %s16 = scalar_lea.sflag [#allocation7], 1
    %17 = vsyncpa %s16, 0
    loop: start=0, step=1, limit=4
    $region2: #{embedding_forward.1} parent=1 // loop_pre_header
      _
    $region3: #{embedding_forward.1} parent=1 // loop_header
      %s19 = sphi 0, %s23
      %p20 = scmp.ge.s32.totalorder %s19, 4
      %s26 = sphi 0, %s38
      %s27 = sphi 0, %s34
      %s28 = sphi 0, %s26
      %s29 = sphi 0, %s27
      %s30 = sphi 0, %s28
      %s31 = sphi 0, %s29
      %s39 = sphi 0, %s39
      %s41 = sphi 0, %s39
      %s42 = sphi 0, %s41
      %s56 = sphi 0, %s42
      %s62 = sphi 0, %s64
      %s65 = sphi 0, %s62
      %s66 = sphi 0, %s65
      %s82 = sphi 0, %s66
      %s90 = sphi 0, %s92
      %s93 = sphi 0, %s90
      %s94 = sphi 0, %s93
      %s110 = sphi 0, %s94
    $region4: #{embedding_forward.1} parent=1 // loop_header_branch
      %22 = sbr.rel (%p20) target = $region8
    $region5: #{embedding_forward.1} parent=1 // loop_body
      %s24 = ssub.s32 %s19, 1
      %s25 = ssub.s32 %s19, 2
      %s32 = sadd.s32 1, %s27
      %p33 = scmp.ge.s32.totalorder %s32, 2
      %s34 = scalar_select %p33, 0, %s32
      %s35 = sadd.s32 1, %s26
      %s36 = scalar_select %p33, %s35, %s26
      %p37 = scmp.ge.s32.totalorder %s36, 1
      %s38 = scalar_select %p37, 0, %s36
      %s40 = sadd.s32 %s39, 1
      %p43 = scmp.eq.s32.totalorder %s19, 1
      %p44 = scmp.ne.s32.totalorder %s39, %s41
      %p45 = scmp.eq.s32.totalorder %s19, 0
      %p46 = por %p44, %p45
      %p47 = scmp.ne.s32.totalorder %s39, %s41
      %p48 = scmp.eq.s32.totalorder %s24, 1
      %p49 = por %p47, %p48
      %p50 = scmp.ne.s32.totalorder %s41, %s42
      %p51 = scmp.eq.s32.totalorder %s24, 0
      %p52 = por %p50, %p51
      %p53 = scmp.ne.s32.totalorder %s41, %s42
      %p54 = scmp.eq.s32.totalorder %s25, 1
      %p55 = por %p53, %p54
      %p57 = scmp.ne.s32.totalorder %s42, %s56
      %p58 = scmp.eq.s32.totalorder %s25, 0
      %p59 = por %p57, %p58
      %s60 = ssub.s32 %s26, %s38
      %p61 = scmp.eq.s32.totalorder %s60, 0
      %s63 = sadd.s32 %s62, 1
      %s64 = scalar_select %p61, %s62, %s63
      %p67 = pneg %p61
      %p68 = scmp.eq.s32.totalorder %s19, 1
      %p69 = por %p67, %p68
      %p70 = scmp.ne.s32.totalorder %s62, %s65
      %p71 = scmp.eq.s32.totalorder %s19, 0
      %p72 = por %p70, %p71
      %p73 = scmp.ne.s32.totalorder %s62, %s65
      %p74 = scmp.eq.s32.totalorder %s24, 1
      %p75 = por %p73, %p74
      %p76 = scmp.ne.s32.totalorder %s65, %s66
      %p77 = scmp.eq.s32.totalorder %s24, 0
      %p78 = por %p76, %p77
      %p79 = scmp.ne.s32.totalorder %s65, %s66
      %p80 = scmp.eq.s32.totalorder %s25, 1
      %p81 = por %p79, %p80
      %p83 = scmp.ne.s32.totalorder %s66, %s82
      %p84 = scmp.eq.s32.totalorder %s25, 0
      %p85 = por %p83, %p84
      %s86 = ssub.s32 %s27, %s34
      %s87 = ssub.s32 %s26, %s38
      %s88 = sor.u32 %s86, %s87
      %p89 = scmp.eq.s32.totalorder %s88, 0
      %s91 = sadd.s32 %s90, 1
      %s92 = scalar_select %p89, %s90, %s91
      %p95 = pneg %p89
      %p96 = scmp.eq.s32.totalorder %s19, 1
      %p97 = por %p95, %p96
      %p98 = scmp.ne.s32.totalorder %s90, %s93
      %p99 = scmp.eq.s32.totalorder %s19, 0
      %p100 = por %p98, %p99
      %p101 = scmp.ne.s32.totalorder %s90, %s93
      %p102 = scmp.eq.s32.totalorder %s24, 1
      %p103 = por %p101, %p102
      %p104 = scmp.ne.s32.totalorder %s93, %s94
      %p105 = scmp.eq.s32.totalorder %s24, 0
      %p106 = por %p104, %p105
      %p107 = scmp.ne.s32.totalorder %s93, %s94
      %p108 = scmp.eq.s32.totalorder %s25, 1
      %p109 = por %p107, %p108
      %p111 = scmp.ne.s32.totalorder %s94, %s110
      %p112 = scmp.eq.s32.totalorder %s25, 0
      %p113 = por %p111, %p112
      %p114 = scmp.le.s32.totalorder 1, %s19
      %p115 = scmp.lt.s32.totalorder %s19, 3
      %p116 = pnand %p114, %p115
      %p117 = pneg %p116
      // Predicated region
      $region9: #{embedding_forward.1} parent=5 // pred_check
        _
      $region10: #{embedding_forward.1} parent=5 // pred_check_branch
        %119 = sbr.rel (%p116) target = $region12
      $region11: #{embedding_forward.1} parent=5 // pred_region
        %s120 = ssub.s32 %s19, 1
        // Predicated region
        $region13: #{embedding_forward.1} parent=11 // pred_check
          %p121 = pneg %p52
        $region14: #{embedding_forward.1} parent=11 // pred_check_branch
          %123 = sbr.rel (%p121) target = $region16
        $region15: #{embedding_forward.1} parent=11 // pred_region
          %s125 = ssub.s32 16384, 16384
          %126 = vsyncadd [#allocation6], %s125
          %s127 = sshll.u32 [#allocation5], 4
          %s128 = int_to_ptr.vmem [resolvable:$true] %s127
          %133 = dma.hbm_to_vmem [thread:$0]  %s1, 16384, %s128, [#allocation6], 256, 256, 16
        $region16: #{embedding_forward.1} parent=11 // pred_fallthru
          _
        // Predicated region
        $region17: #{embedding_forward.1} parent=11 // pred_check
          %p134 = pneg %p78
        $region18: #{embedding_forward.1} parent=11 // pred_check_branch
          %136 = sbr.rel (%p134) target = $region20
        $region19: #{embedding_forward.1} parent=11 // pred_region
          %p137 = scmp.lt.s32.totalorder %s28, 0
          %s138 = scalar_select %p137, %s28, 0
          %s139 = smul.addr %s138, 2
          %s140 = smul.addr %s139, 8
          %s141 = scalar_lea.vmem %s2, %s140
        $region20: #{embedding_forward.1} parent=11 // pred_fallthru
          _
      $region12: #{embedding_forward.1} parent=5 // pred_fallthru
        _
      %p142 = scmp.lt.s32.totalorder %s19, 2
      // Predicated region
      $region21: #{embedding_forward.1} parent=5 // pred_check
        %p143 = pneg %p142
      $region22: #{embedding_forward.1} parent=5 // pred_check_branch
        %145 = sbr.rel (%p143) target = $region24
      $region23: #{embedding_forward.1} parent=5 // pred_region
        _
      $region24: #{embedding_forward.1} parent=5 // pred_fallthru
        _
      %p146 = scmp.le.s32.totalorder 1, %s19
      %p147 = scmp.lt.s32.totalorder %s19, 3
      %p148 = pnand %p146, %p147
      %p149 = pneg %p148
      // Predicated region
      $region25: #{embedding_forward.1} parent=5 // pred_check
        _
      $region26: #{embedding_forward.1} parent=5 // pred_check_branch
        %151 = sbr.rel (%p148) target = $region28
      $region27: #{embedding_forward.1} parent=5 // pred_region
        %s152 = ssub.s32 %s19, 1
        // Predicated region
        $region29: #{embedding_forward.1} parent=27 // pred_check
          %p153 = pneg %p52
        $region30: #{embedding_forward.1} parent=27 // pred_check_branch
          %155 = sbr.rel (%p153) target = $region32
        $region31: #{embedding_forward.1} parent=27 // pred_region
          %156 = dma.done [#allocation6], 16384
        $region32: #{embedding_forward.1} parent=27 // pred_fallthru
          _
        %p157 = pneg %p52
        %p158 = pneg %p49
        %p159 = scmp.lt.s32.totalorder %s28, 0
        %s160 = scalar_select %p159, %s28, 0
        %s161 = smul.addr %s160, 2
        %s162 = smul.addr %s161, 8
        %s163 = scalar_lea.vmem %s2, %s162
        %p164 = pneg %p78
        %p165 = pneg %p75
        %p166 = pneg %p106
        %p167 = pneg %p103
        %s168 = sand.u32 %s93, 1
        %s169 = scalar_lea.sflag [#allocation7], %s168
        %s170 = sand.u32 %s93, 1
        %s171 = smul.addr %s170, 16
        %s172 = scalar_lea.vmem [#allocation8], %s171
        %p173 = scmp.lt.s32.totalorder %s28, 0
        %s174 = scalar_select %p173, %s28, 0
        %s175 = smul.addr %s174, 2
        %s176 = smul.addr %s175, 8
        %s177 = scalar_lea.vmem %s2, %s176
        %s178 = smul.u32 %s29, 8
        %s179 = smul.u32 %s28, 8
        %s180 = sadd.s32 %s178, %s179
        %s181 = sld [smem:[#allocation4 + %s180]]
        %p182 = scmp.gt.s32.totalorder %s181, 0
        %s183 = scalar_select %p182, %s181, 0
        %p184 = scmp.lt.s32.totalorder %s183, 511
        %s185 = scalar_select %p184, %s183, 511
        %s186 = sshrl.u32 %s185, 3
        %s187 = sand.u32 %s185, 7
        %s188 = smul.u32 %s186, 16
        %s189 = sadd.s32 %s187, %s188
        %s190 = scalar_lea.vmem [#allocation5], %s189
        %p192 = scmp.lt.u32.totalorder 1, 8
        %p193 = pneg %p192
        // Predicated region
        $region33: #{embedding_forward.1} parent=27 // pred_check
          _
        $region34: #{embedding_forward.1} parent=27 // pred_check_branch
          %195 = sbr.rel (%p192) target = $region36
        $region35: #{embedding_forward.1} parent=27 // pred_region
          %s212 = sand.u32 1, 7
          %p213 = scmp.eq.s32.totalorder %s212, 0
          %p214 = pneg %p213
          // Predicated region
          $region48: #{embedding_forward.1} parent=35 // pred_check
            _
          $region49: #{embedding_forward.1} parent=35 // pred_check_branch
            %216 = sbr.rel (%p213) target = $region51
          $region50: #{embedding_forward.1} parent=35 // pred_region
            %s217 = sand.u32 1, 7
            %s218 = ssub.s32 1, %s217
            %s219 = scalar_lea.vmem %s190, %s218 [#allocation5]
            %s220 = ssub.s32 1, %s217
            %s221 = scalar_lea.vmem %s172, %s220 [#allocation8]
            %s222 = sshllo.u32 0, %s217
            loop: start=0, step=1, limit=1
            $region52: #{embedding_forward.1} parent=50 // loop_pre_header
              _
            $region53: #{embedding_forward.1} parent=50 // loop_header
              %s224 = sphi 0, %s228
              %p225 = scmp.ge.s32.totalorder %s224, 1
              %s229 = sphi %s219, %s219
              %s230 = sphi %s221, %s221
            $region54: #{embedding_forward.1} parent=50 // loop_header_branch
              %227 = sbr.rel (%p225) target = $region58
            $region55: #{embedding_forward.1} parent=50 // loop_body
              %v231 = vld [vmem:[%s229] sm:%s222]
              %232 = vst [vmem:[%s230] sm:%s222] %v231
              %v233 = vld [vmem:[%s229 + $0x8] sm:%s222]
              %234 = vst [vmem:[%s230 + $0x8] sm:%s222] %v233
            $region56: #{embedding_forward.1} parent=50 // loop_footer
              %s228 = sadd.s32 1, %s224
            $region57: #{embedding_forward.1} parent=50 // loop_footer_branch
              %223 = sbr.rel target = $region53
            $region58: #{embedding_forward.1} parent=50 // loop_exit
              _
          $region51: #{embedding_forward.1} parent=35 // pred_fallthru
            _
        $region36: #{embedding_forward.1} parent=27 // pred_fallthru
          _
        // Predicated region
        $region37: #{embedding_forward.1} parent=27 // pred_check
          %p196 = pneg %p192
        $region38: #{embedding_forward.1} parent=27 // pred_check_branch
          %198 = sbr.rel (%p196) target = $region40
        $region39: #{embedding_forward.1} parent=27 // pred_region
          %s199 = sshllo.u32 0, 1
          loop: start=0, step=1, limit=1
          $region41: #{embedding_forward.1} parent=39 // loop_pre_header
            _
          $region42: #{embedding_forward.1} parent=39 // loop_header
            %s201 = sphi 0, %s205
            %p202 = scmp.ge.s32.totalorder %s201, 1
            %s206 = sphi %s190, %s190
            %s207 = sphi %s172, %s172
          $region43: #{embedding_forward.1} parent=39 // loop_header_branch
            %204 = sbr.rel (%p202) target = $region47
          $region44: #{embedding_forward.1} parent=39 // loop_body
            %v208 = vld [vmem:[%s206] sm:%s199]
            %209 = vst [vmem:[%s207] sm:%s199] %v208
            %v210 = vld [vmem:[%s206 + $0x8] sm:%s199]
            %211 = vst [vmem:[%s207 + $0x8] sm:%s199] %v210
          $region45: #{embedding_forward.1} parent=39 // loop_footer
            %s205 = sadd.s32 1, %s201
          $region46: #{embedding_forward.1} parent=39 // loop_footer_branch
            %200 = sbr.rel target = $region42
          $region47: #{embedding_forward.1} parent=39 // loop_exit
            _
        $region40: #{embedding_forward.1} parent=27 // pred_fallthru
          _
        // Predicated region
        $region59: #{embedding_forward.1} parent=27 // pred_check
          _
        $region60: #{embedding_forward.1} parent=27 // pred_check_branch
          %237 = sbr.rel (0) target = $region62
        $region61: #{embedding_forward.1} parent=27 // pred_region
          %238 = vsyncadd [#allocation2], 32
        $region62: #{embedding_forward.1} parent=27 // pred_fallthru
          _
        %s239 = sadd.s32 %s180, 1
        %s240 = sld [smem:[#allocation4 + %s239]]
        %p241 = scmp.gt.s32.totalorder %s240, 0
        %s242 = scalar_select %p241, %s240, 0
        %p243 = scmp.lt.s32.totalorder %s242, 511
        %s244 = scalar_select %p243, %s242, 511
        %s245 = sshrl.u32 %s244, 3
        %s246 = sand.u32 %s244, 7
        %s247 = smul.u32 %s245, 16
        %s248 = sadd.s32 %s246, %s247
        %s249 = scalar_lea.vmem [#allocation5], %s248
        %s250 = scalar_lea.vmem %s172, 1 [#allocation8]
        %p252 = scmp.lt.u32.totalorder 1, 8
        %p253 = pneg %p252
        // Predicated region
        $region63: #{embedding_forward.1} parent=27 // pred_check
          _
        $region64: #{embedding_forward.1} parent=27 // pred_check_branch
          %255 = sbr.rel (%p252) target = $region66
        $region65: #{embedding_forward.1} parent=27 // pred_region
          %s272 = sand.u32 1, 7
          %p273 = scmp.eq.s32.totalorder %s272, 0
          %p274 = pneg %p273
          // Predicated region
          $region78: #{embedding_forward.1} parent=65 // pred_check
            _
          $region79: #{embedding_forward.1} parent=65 // pred_check_branch
            %276 = sbr.rel (%p273) target = $region81
          $region80: #{embedding_forward.1} parent=65 // pred_region
            %s277 = sand.u32 1, 7
            %s278 = ssub.s32 1, %s277
            %s279 = scalar_lea.vmem %s249, %s278 [#allocation5]
            %s280 = ssub.s32 1, %s277
            %s281 = scalar_lea.vmem %s250, %s280 [#allocation8]
            %s282 = sshllo.u32 0, %s277
            loop: start=0, step=1, limit=1
            $region82: #{embedding_forward.1} parent=80 // loop_pre_header
              _
            $region83: #{embedding_forward.1} parent=80 // loop_header
              %s284 = sphi 0, %s288
              %p285 = scmp.ge.s32.totalorder %s284, 1
              %s289 = sphi %s279, %s279
              %s290 = sphi %s281, %s281
            $region84: #{embedding_forward.1} parent=80 // loop_header_branch
              %287 = sbr.rel (%p285) target = $region88
            $region85: #{embedding_forward.1} parent=80 // loop_body
              %v291 = vld [vmem:[%s289] sm:%s282]
              %292 = vst [vmem:[%s290] sm:%s282] %v291
              %v293 = vld [vmem:[%s289 + $0x8] sm:%s282]
              %294 = vst [vmem:[%s290 + $0x8] sm:%s282] %v293
            $region86: #{embedding_forward.1} parent=80 // loop_footer
              %s288 = sadd.s32 1, %s284
            $region87: #{embedding_forward.1} parent=80 // loop_footer_branch
              %283 = sbr.rel target = $region83
            $region88: #{embedding_forward.1} parent=80 // loop_exit
              _
          $region81: #{embedding_forward.1} parent=65 // pred_fallthru
            _
        $region66: #{embedding_forward.1} parent=27 // pred_fallthru
          _
        // Predicated region
        $region67: #{embedding_forward.1} parent=27 // pred_check
          %p256 = pneg %p252
        $region68: #{embedding_forward.1} parent=27 // pred_check_branch
          %258 = sbr.rel (%p256) target = $region70
        $region69: #{embedding_forward.1} parent=27 // pred_region
          %s259 = sshllo.u32 0, 1
          loop: start=0, step=1, limit=1
          $region71: #{embedding_forward.1} parent=69 // loop_pre_header
            _
          $region72: #{embedding_forward.1} parent=69 // loop_header
            %s261 = sphi 0, %s265
            %p262 = scmp.ge.s32.totalorder %s261, 1
            %s266 = sphi %s249, %s249
            %s267 = sphi %s250, %s250
          $region73: #{embedding_forward.1} parent=69 // loop_header_branch
            %264 = sbr.rel (%p262) target = $region77
          $region74: #{embedding_forward.1} parent=69 // loop_body
            %v268 = vld [vmem:[%s266] sm:%s259]
            %269 = vst [vmem:[%s267] sm:%s259] %v268
            %v270 = vld [vmem:[%s266 + $0x8] sm:%s259]
            %271 = vst [vmem:[%s267 + $0x8] sm:%s259] %v270
          $region75: #{embedding_forward.1} parent=69 // loop_footer
            %s265 = sadd.s32 1, %s261
          $region76: #{embedding_forward.1} parent=69 // loop_footer_branch
            %260 = sbr.rel target = $region72
          $region77: #{embedding_forward.1} parent=69 // loop_exit
            _
        $region70: #{embedding_forward.1} parent=27 // pred_fallthru
          _
        // Predicated region
        $region89: #{embedding_forward.1} parent=27 // pred_check
          _
        $region90: #{embedding_forward.1} parent=27 // pred_check_branch
          %297 = sbr.rel (0) target = $region92
        $region91: #{embedding_forward.1} parent=27 // pred_region
          %298 = vsyncadd [#allocation2], 32
        $region92: #{embedding_forward.1} parent=27 // pred_fallthru
          _
        %s299 = sadd.s32 %s180, 2
        %s300 = sld [smem:[#allocation4 + %s299]]
        %p301 = scmp.gt.s32.totalorder %s300, 0
        %s302 = scalar_select %p301, %s300, 0
        %p303 = scmp.lt.s32.totalorder %s302, 511
        %s304 = scalar_select %p303, %s302, 511
        %s305 = sshrl.u32 %s304, 3
        %s306 = sand.u32 %s304, 7
        %s307 = smul.u32 %s305, 16
        %s308 = sadd.s32 %s306, %s307
        %s309 = scalar_lea.vmem [#allocation5], %s308
        %s310 = scalar_lea.vmem %s172, 2 [#allocation8]
        %p312 = scmp.lt.u32.totalorder 1, 8
        %p313 = pneg %p312
        // Predicated region
        $region93: #{embedding_forward.1} parent=27 // pred_check
          _
        $region94: #{embedding_forward.1} parent=27 // pred_check_branch
          %315 = sbr.rel (%p312) target = $region96
        $region95: #{embedding_forward.1} parent=27 // pred_region
          %s332 = sand.u32 1, 7
          %p333 = scmp.eq.s32.totalorder %s332, 0
          %p334 = pneg %p333
          // Predicated region
          $region108: #{embedding_forward.1} parent=95 // pred_check
            _
          $region109: #{embedding_forward.1} parent=95 // pred_check_branch
            %336 = sbr.rel (%p333) target = $region111
          $region110: #{embedding_forward.1} parent=95 // pred_region
            %s337 = sand.u32 1, 7
            %s338 = ssub.s32 1, %s337
            %s339 = scalar_lea.vmem %s309, %s338 [#allocation5]
            %s340 = ssub.s32 1, %s337
            %s341 = scalar_lea.vmem %s310, %s340 [#allocation8]
            %s342 = sshllo.u32 0, %s337
            loop: start=0, step=1, limit=1
            $region112: #{embedding_forward.1} parent=110 // loop_pre_header
              _
            $region113: #{embedding_forward.1} parent=110 // loop_header
              %s344 = sphi 0, %s348
              %p345 = scmp.ge.s32.totalorder %s344, 1
              %s349 = sphi %s339, %s339
              %s350 = sphi %s341, %s341
            $region114: #{embedding_forward.1} parent=110 // loop_header_branch
              %347 = sbr.rel (%p345) target = $region118
            $region115: #{embedding_forward.1} parent=110 // loop_body
              %v351 = vld [vmem:[%s349] sm:%s342]
              %352 = vst [vmem:[%s350] sm:%s342] %v351
              %v353 = vld [vmem:[%s349 + $0x8] sm:%s342]
              %354 = vst [vmem:[%s350 + $0x8] sm:%s342] %v353
            $region116: #{embedding_forward.1} parent=110 // loop_footer
              %s348 = sadd.s32 1, %s344
            $region117: #{embedding_forward.1} parent=110 // loop_footer_branch
              %343 = sbr.rel target = $region113
            $region118: #{embedding_forward.1} parent=110 // loop_exit
              _
          $region111: #{embedding_forward.1} parent=95 // pred_fallthru
            _
        $region96: #{embedding_forward.1} parent=27 // pred_fallthru
          _
        // Predicated region
        $region97: #{embedding_forward.1} parent=27 // pred_check
          %p316 = pneg %p312
        $region98: #{embedding_forward.1} parent=27 // pred_check_branch
          %318 = sbr.rel (%p316) target = $region100
        $region99: #{embedding_forward.1} parent=27 // pred_region
          %s319 = sshllo.u32 0, 1
          loop: start=0, step=1, limit=1
          $region101: #{embedding_forward.1} parent=99 // loop_pre_header
            _
          $region102: #{embedding_forward.1} parent=99 // loop_header
            %s321 = sphi 0, %s325
            %p322 = scmp.ge.s32.totalorder %s321, 1
            %s326 = sphi %s309, %s309
            %s327 = sphi %s310, %s310
          $region103: #{embedding_forward.1} parent=99 // loop_header_branch
            %324 = sbr.rel (%p322) target = $region107
          $region104: #{embedding_forward.1} parent=99 // loop_body
            %v328 = vld [vmem:[%s326] sm:%s319]
            %329 = vst [vmem:[%s327] sm:%s319] %v328
            %v330 = vld [vmem:[%s326 + $0x8] sm:%s319]
            %331 = vst [vmem:[%s327 + $0x8] sm:%s319] %v330
          $region105: #{embedding_forward.1} parent=99 // loop_footer
            %s325 = sadd.s32 1, %s321
          $region106: #{embedding_forward.1} parent=99 // loop_footer_branch
            %320 = sbr.rel target = $region102
          $region107: #{embedding_forward.1} parent=99 // loop_exit
            _
        $region100: #{embedding_forward.1} parent=27 // pred_fallthru
          _
        // Predicated region
        $region119: #{embedding_forward.1} parent=27 // pred_check
          _
        $region120: #{embedding_forward.1} parent=27 // pred_check_branch
          %357 = sbr.rel (0) target = $region122
        $region121: #{embedding_forward.1} parent=27 // pred_region
          %358 = vsyncadd [#allocation2], 32
        $region122: #{embedding_forward.1} parent=27 // pred_fallthru
          _
        %s359 = sadd.s32 %s180, 3
        %s360 = sld [smem:[#allocation4 + %s359]]
        %p361 = scmp.gt.s32.totalorder %s360, 0
        %s362 = scalar_select %p361, %s360, 0
        %p363 = scmp.lt.s32.totalorder %s362, 511
        %s364 = scalar_select %p363, %s362, 511
        %s365 = sshrl.u32 %s364, 3
        %s366 = sand.u32 %s364, 7
        %s367 = smul.u32 %s365, 16
        %s368 = sadd.s32 %s366, %s367
        %s369 = scalar_lea.vmem [#allocation5], %s368
        %s370 = scalar_lea.vmem %s172, 3 [#allocation8]
        %p372 = scmp.lt.u32.totalorder 1, 8
        %p373 = pneg %p372
        // Predicated region
        $region123: #{embedding_forward.1} parent=27 // pred_check
          _
        $region124: #{embedding_forward.1} parent=27 // pred_check_branch
          %375 = sbr.rel (%p372) target = $region126
        $region125: #{embedding_forward.1} parent=27 // pred_region
          %s392 = sand.u32 1, 7
          %p393 = scmp.eq.s32.totalorder %s392, 0
          %p394 = pneg %p393
          // Predicated region
          $region138: #{embedding_forward.1} parent=125 // pred_check
            _
          $region139: #{embedding_forward.1} parent=125 // pred_check_branch
            %396 = sbr.rel (%p393) target = $region141
          $region140: #{embedding_forward.1} parent=125 // pred_region
            %s397 = sand.u32 1, 7
            %s398 = ssub.s32 1, %s397
            %s399 = scalar_lea.vmem %s369, %s398 [#allocation5]
            %s400 = ssub.s32 1, %s397
            %s401 = scalar_lea.vmem %s370, %s400 [#allocation8]
            %s402 = sshllo.u32 0, %s397
            loop: start=0, step=1, limit=1
            $region142: #{embedding_forward.1} parent=140 // loop_pre_header
              _
            $region143: #{embedding_forward.1} parent=140 // loop_header
              %s404 = sphi 0, %s408
              %p405 = scmp.ge.s32.totalorder %s404, 1
              %s409 = sphi %s399, %s399
              %s410 = sphi %s401, %s401
            $region144: #{embedding_forward.1} parent=140 // loop_header_branch
              %407 = sbr.rel (%p405) target = $region148
            $region145: #{embedding_forward.1} parent=140 // loop_body
              %v411 = vld [vmem:[%s409] sm:%s402]
              %412 = vst [vmem:[%s410] sm:%s402] %v411
              %v413 = vld [vmem:[%s409 + $0x8] sm:%s402]
              %414 = vst [vmem:[%s410 + $0x8] sm:%s402] %v413
            $region146: #{embedding_forward.1} parent=140 // loop_footer
              %s408 = sadd.s32 1, %s404
            $region147: #{embedding_forward.1} parent=140 // loop_footer_branch
              %403 = sbr.rel target = $region143
            $region148: #{embedding_forward.1} parent=140 // loop_exit
              _
          $region141: #{embedding_forward.1} parent=125 // pred_fallthru
            _
        $region126: #{embedding_forward.1} parent=27 // pred_fallthru
          _
        // Predicated region
        $region127: #{embedding_forward.1} parent=27 // pred_check
          %p376 = pneg %p372
        $region128: #{embedding_forward.1} parent=27 // pred_check_branch
          %378 = sbr.rel (%p376) target = $region130
        $region129: #{embedding_forward.1} parent=27 // pred_region
          %s379 = sshllo.u32 0, 1
          loop: start=0, step=1, limit=1
          $region131: #{embedding_forward.1} parent=129 // loop_pre_header
            _
          $region132: #{embedding_forward.1} parent=129 // loop_header
            %s381 = sphi 0, %s385
            %p382 = scmp.ge.s32.totalorder %s381, 1
            %s386 = sphi %s369, %s369
            %s387 = sphi %s370, %s370
          $region133: #{embedding_forward.1} parent=129 // loop_header_branch
            %384 = sbr.rel (%p382) target = $region137
          $region134: #{embedding_forward.1} parent=129 // loop_body
            %v388 = vld [vmem:[%s386] sm:%s379]
            %389 = vst [vmem:[%s387] sm:%s379] %v388
            %v390 = vld [vmem:[%s386 + $0x8] sm:%s379]
            %391 = vst [vmem:[%s387 + $0x8] sm:%s379] %v390
          $region135: #{embedding_forward.1} parent=129 // loop_footer
            %s385 = sadd.s32 1, %s381
          $region136: #{embedding_forward.1} parent=129 // loop_footer_branch
            %380 = sbr.rel target = $region132
          $region137: #{embedding_forward.1} parent=129 // loop_exit
            _
        $region130: #{embedding_forward.1} parent=27 // pred_fallthru
          _
        // Predicated region
        $region149: #{embedding_forward.1} parent=27 // pred_check
          _
        $region150: #{embedding_forward.1} parent=27 // pred_check_branch
          %417 = sbr.rel (0) target = $region152
        $region151: #{embedding_forward.1} parent=27 // pred_region
          %418 = vsyncadd [#allocation2], 32
        $region152: #{embedding_forward.1} parent=27 // pred_fallthru
          _
        %s419 = sadd.s32 %s180, 4
        %s420 = sld [smem:[#allocation4 + %s419]]
        %p421 = scmp.gt.s32.totalorder %s420, 0
        %s422 = scalar_select %p421, %s420, 0
        %p423 = scmp.lt.s32.totalorder %s422, 511
        %s424 = scalar_select %p423, %s422, 511
        %s425 = sshrl.u32 %s424, 3
        %s426 = sand.u32 %s424, 7
        %s427 = smul.u32 %s425, 16
        %s428 = sadd.s32 %s426, %s427
        %s429 = scalar_lea.vmem [#allocation5], %s428
        %s430 = scalar_lea.vmem %s172, 4 [#allocation8]
        %p432 = scmp.lt.u32.totalorder 1, 8
        %p433 = pneg %p432
        // Predicated region
        $region153: #{embedding_forward.1} parent=27 // pred_check
          _
        $region154: #{embedding_forward.1} parent=27 // pred_check_branch
          %435 = sbr.rel (%p432) target = $region156
        $region155: #{embedding_forward.1} parent=27 // pred_region
          %s452 = sand.u32 1, 7
          %p453 = scmp.eq.s32.totalorder %s452, 0
          %p454 = pneg %p453
          // Predicated region
          $region168: #{embedding_forward.1} parent=155 // pred_check
            _
          $region169: #{embedding_forward.1} parent=155 // pred_check_branch
            %456 = sbr.rel (%p453) target = $region171
          $region170: #{embedding_forward.1} parent=155 // pred_region
            %s457 = sand.u32 1, 7
            %s458 = ssub.s32 1, %s457
            %s459 = scalar_lea.vmem %s429, %s458 [#allocation5]
            %s460 = ssub.s32 1, %s457
            %s461 = scalar_lea.vmem %s430, %s460 [#allocation8]
            %s462 = sshllo.u32 0, %s457
            loop: start=0, step=1, limit=1
            $region172: #{embedding_forward.1} parent=170 // loop_pre_header
              _
            $region173: #{embedding_forward.1} parent=170 // loop_header
              %s464 = sphi 0, %s468
              %p465 = scmp.ge.s32.totalorder %s464, 1
              %s469 = sphi %s459, %s459
              %s470 = sphi %s461, %s461
            $region174: #{embedding_forward.1} parent=170 // loop_header_branch
              %467 = sbr.rel (%p465) target = $region178
            $region175: #{embedding_forward.1} parent=170 // loop_body
              %v471 = vld [vmem:[%s469] sm:%s462]
              %472 = vst [vmem:[%s470] sm:%s462] %v471
              %v473 = vld [vmem:[%s469 + $0x8] sm:%s462]
              %474 = vst [vmem:[%s470 + $0x8] sm:%s462] %v473
            $region176: #{embedding_forward.1} parent=170 // loop_footer
              %s468 = sadd.s32 1, %s464
            $region177: #{embedding_forward.1} parent=170 // loop_footer_branch
              %463 = sbr.rel target = $region173
            $region178: #{embedding_forward.1} parent=170 // loop_exit
              _
          $region171: #{embedding_forward.1} parent=155 // pred_fallthru
            _
        $region156: #{embedding_forward.1} parent=27 // pred_fallthru
          _
        // Predicated region
        $region157: #{embedding_forward.1} parent=27 // pred_check
          %p436 = pneg %p432
        $region158: #{embedding_forward.1} parent=27 // pred_check_branch
          %438 = sbr.rel (%p436) target = $region160
        $region159: #{embedding_forward.1} parent=27 // pred_region
          %s439 = sshllo.u32 0, 1
          loop: start=0, step=1, limit=1
          $region161: #{embedding_forward.1} parent=159 // loop_pre_header
            _
          $region162: #{embedding_forward.1} parent=159 // loop_header
            %s441 = sphi 0, %s445
            %p442 = scmp.ge.s32.totalorder %s441, 1
            %s446 = sphi %s429, %s429
            %s447 = sphi %s430, %s430
          $region163: #{embedding_forward.1} parent=159 // loop_header_branch
            %444 = sbr.rel (%p442) target = $region167
          $region164: #{embedding_forward.1} parent=159 // loop_body
            %v448 = vld [vmem:[%s446] sm:%s439]
            %449 = vst [vmem:[%s447] sm:%s439] %v448
            %v450 = vld [vmem:[%s446 + $0x8] sm:%s439]
            %451 = vst [vmem:[%s447 + $0x8] sm:%s439] %v450
          $region165: #{embedding_forward.1} parent=159 // loop_footer
            %s445 = sadd.s32 1, %s441
          $region166: #{embedding_forward.1} parent=159 // loop_footer_branch
            %440 = sbr.rel target = $region162
          $region167: #{embedding_forward.1} parent=159 // loop_exit
            _
        $region160: #{embedding_forward.1} parent=27 // pred_fallthru
          _
        // Predicated region
        $region179: #{embedding_forward.1} parent=27 // pred_check
          _
        $region180: #{embedding_forward.1} parent=27 // pred_check_branch
          %477 = sbr.rel (0) target = $region182
        $region181: #{embedding_forward.1} parent=27 // pred_region
          %478 = vsyncadd [#allocation2], 32
        $region182: #{embedding_forward.1} parent=27 // pred_fallthru
          _
        %s479 = sadd.s32 %s180, 5
        %s480 = sld [smem:[#allocation4 + %s479]]
        %p481 = scmp.gt.s32.totalorder %s480, 0
        %s482 = scalar_select %p481, %s480, 0
        %p483 = scmp.lt.s32.totalorder %s482, 511
        %s484 = scalar_select %p483, %s482, 511
        %s485 = sshrl.u32 %s484, 3
        %s486 = sand.u32 %s484, 7
        %s487 = smul.u32 %s485, 16
        %s488 = sadd.s32 %s486, %s487
        %s489 = scalar_lea.vmem [#allocation5], %s488
        %s490 = scalar_lea.vmem %s172, 5 [#allocation8]
        %p492 = scmp.lt.u32.totalorder 1, 8
        %p493 = pneg %p492
        // Predicated region
        $region183: #{embedding_forward.1} parent=27 // pred_check
          _
        $region184: #{embedding_forward.1} parent=27 // pred_check_branch
          %495 = sbr.rel (%p492) target = $region186
        $region185: #{embedding_forward.1} parent=27 // pred_region
          %s512 = sand.u32 1, 7
          %p513 = scmp.eq.s32.totalorder %s512, 0
          %p514 = pneg %p513
          // Predicated region
          $region198: #{embedding_forward.1} parent=185 // pred_check
            _
          $region199: #{embedding_forward.1} parent=185 // pred_check_branch
            %516 = sbr.rel (%p513) target = $region201
          $region200: #{embedding_forward.1} parent=185 // pred_region
            %s517 = sand.u32 1, 7
            %s518 = ssub.s32 1, %s517
            %s519 = scalar_lea.vmem %s489, %s518 [#allocation5]
            %s520 = ssub.s32 1, %s517
            %s521 = scalar_lea.vmem %s490, %s520 [#allocation8]
            %s522 = sshllo.u32 0, %s517
            loop: start=0, step=1, limit=1
            $region202: #{embedding_forward.1} parent=200 // loop_pre_header
              _
            $region203: #{embedding_forward.1} parent=200 // loop_header
              %s524 = sphi 0, %s528
              %p525 = scmp.ge.s32.totalorder %s524, 1
              %s529 = sphi %s519, %s519
              %s530 = sphi %s521, %s521
            $region204: #{embedding_forward.1} parent=200 // loop_header_branch
              %527 = sbr.rel (%p525) target = $region208
            $region205: #{embedding_forward.1} parent=200 // loop_body
              %v531 = vld [vmem:[%s529] sm:%s522]
              %532 = vst [vmem:[%s530] sm:%s522] %v531
              %v533 = vld [vmem:[%s529 + $0x8] sm:%s522]
              %534 = vst [vmem:[%s530 + $0x8] sm:%s522] %v533
            $region206: #{embedding_forward.1} parent=200 // loop_footer
              %s528 = sadd.s32 1, %s524
            $region207: #{embedding_forward.1} parent=200 // loop_footer_branch
              %523 = sbr.rel target = $region203
            $region208: #{embedding_forward.1} parent=200 // loop_exit
              _
          $region201: #{embedding_forward.1} parent=185 // pred_fallthru
            _
        $region186: #{embedding_forward.1} parent=27 // pred_fallthru
          _
        // Predicated region
        $region187: #{embedding_forward.1} parent=27 // pred_check
          %p496 = pneg %p492
        $region188: #{embedding_forward.1} parent=27 // pred_check_branch
          %498 = sbr.rel (%p496) target = $region190
        $region189: #{embedding_forward.1} parent=27 // pred_region
          %s499 = sshllo.u32 0, 1
          loop: start=0, step=1, limit=1
          $region191: #{embedding_forward.1} parent=189 // loop_pre_header
            _
          $region192: #{embedding_forward.1} parent=189 // loop_header
            %s501 = sphi 0, %s505
            %p502 = scmp.ge.s32.totalorder %s501, 1
            %s506 = sphi %s489, %s489
            %s507 = sphi %s490, %s490
          $region193: #{embedding_forward.1} parent=189 // loop_header_branch
            %504 = sbr.rel (%p502) target = $region197
          $region194: #{embedding_forward.1} parent=189 // loop_body
            %v508 = vld [vmem:[%s506] sm:%s499]
            %509 = vst [vmem:[%s507] sm:%s499] %v508
            %v510 = vld [vmem:[%s506 + $0x8] sm:%s499]
            %511 = vst [vmem:[%s507 + $0x8] sm:%s499] %v510
          $region195: #{embedding_forward.1} parent=189 // loop_footer
            %s505 = sadd.s32 1, %s501
          $region196: #{embedding_forward.1} parent=189 // loop_footer_branch
            %500 = sbr.rel target = $region192
          $region197: #{embedding_forward.1} parent=189 // loop_exit
            _
        $region190: #{embedding_forward.1} parent=27 // pred_fallthru
          _
        // Predicated region
        $region209: #{embedding_forward.1} parent=27 // pred_check
          _
        $region210: #{embedding_forward.1} parent=27 // pred_check_branch
          %537 = sbr.rel (0) target = $region212
        $region211: #{embedding_forward.1} parent=27 // pred_region
          %538 = vsyncadd [#allocation2], 32
        $region212: #{embedding_forward.1} parent=27 // pred_fallthru
          _
        %s539 = sadd.s32 %s180, 6
        %s540 = sld [smem:[#allocation4 + %s539]]
        %p541 = scmp.gt.s32.totalorder %s540, 0
        %s542 = scalar_select %p541, %s540, 0
        %p543 = scmp.lt.s32.totalorder %s542, 511
        %s544 = scalar_select %p543, %s542, 511
        %s545 = sshrl.u32 %s544, 3
        %s546 = sand.u32 %s544, 7
        %s547 = smul.u32 %s545, 16
        %s548 = sadd.s32 %s546, %s547
        %s549 = scalar_lea.vmem [#allocation5], %s548
        %s550 = scalar_lea.vmem %s172, 6 [#allocation8]
        %p552 = scmp.lt.u32.totalorder 1, 8
        %p553 = pneg %p552
        // Predicated region
        $region213: #{embedding_forward.1} parent=27 // pred_check
          _
        $region214: #{embedding_forward.1} parent=27 // pred_check_branch
          %555 = sbr.rel (%p552) target = $region216
        $region215: #{embedding_forward.1} parent=27 // pred_region
          %s572 = sand.u32 1, 7
          %p573 = scmp.eq.s32.totalorder %s572, 0
          %p574 = pneg %p573
          // Predicated region
          $region228: #{embedding_forward.1} parent=215 // pred_check
            _
          $region229: #{embedding_forward.1} parent=215 // pred_check_branch
            %576 = sbr.rel (%p573) target = $region231
          $region230: #{embedding_forward.1} parent=215 // pred_region
            %s577 = sand.u32 1, 7
            %s578 = ssub.s32 1, %s577
            %s579 = scalar_lea.vmem %s549, %s578 [#allocation5]
            %s580 = ssub.s32 1, %s577
            %s581 = scalar_lea.vmem %s550, %s580 [#allocation8]
            %s582 = sshllo.u32 0, %s577
            loop: start=0, step=1, limit=1
            $region232: #{embedding_forward.1} parent=230 // loop_pre_header
              _
            $region233: #{embedding_forward.1} parent=230 // loop_header
              %s584 = sphi 0, %s588
              %p585 = scmp.ge.s32.totalorder %s584, 1
              %s589 = sphi %s579, %s579
              %s590 = sphi %s581, %s581
            $region234: #{embedding_forward.1} parent=230 // loop_header_branch
              %587 = sbr.rel (%p585) target = $region238
            $region235: #{embedding_forward.1} parent=230 // loop_body
              %v591 = vld [vmem:[%s589] sm:%s582]
              %592 = vst [vmem:[%s590] sm:%s582] %v591
              %v593 = vld [vmem:[%s589 + $0x8] sm:%s582]
              %594 = vst [vmem:[%s590 + $0x8] sm:%s582] %v593
            $region236: #{embedding_forward.1} parent=230 // loop_footer
              %s588 = sadd.s32 1, %s584
            $region237: #{embedding_forward.1} parent=230 // loop_footer_branch
              %583 = sbr.rel target = $region233
            $region238: #{embedding_forward.1} parent=230 // loop_exit
              _
          $region231: #{embedding_forward.1} parent=215 // pred_fallthru
            _
        $region216: #{embedding_forward.1} parent=27 // pred_fallthru
          _
        // Predicated region
        $region217: #{embedding_forward.1} parent=27 // pred_check
          %p556 = pneg %p552
        $region218: #{embedding_forward.1} parent=27 // pred_check_branch
          %558 = sbr.rel (%p556) target = $region220
        $region219: #{embedding_forward.1} parent=27 // pred_region
          %s559 = sshllo.u32 0, 1
          loop: start=0, step=1, limit=1
          $region221: #{embedding_forward.1} parent=219 // loop_pre_header
            _
          $region222: #{embedding_forward.1} parent=219 // loop_header
            %s561 = sphi 0, %s565
            %p562 = scmp.ge.s32.totalorder %s561, 1
            %s566 = sphi %s549, %s549
            %s567 = sphi %s550, %s550
          $region223: #{embedding_forward.1} parent=219 // loop_header_branch
            %564 = sbr.rel (%p562) target = $region227
          $region224: #{embedding_forward.1} parent=219 // loop_body
            %v568 = vld [vmem:[%s566] sm:%s559]
            %569 = vst [vmem:[%s567] sm:%s559] %v568
            %v570 = vld [vmem:[%s566 + $0x8] sm:%s559]
            %571 = vst [vmem:[%s567 + $0x8] sm:%s559] %v570
          $region225: #{embedding_forward.1} parent=219 // loop_footer
            %s565 = sadd.s32 1, %s561
          $region226: #{embedding_forward.1} parent=219 // loop_footer_branch
            %560 = sbr.rel target = $region222
          $region227: #{embedding_forward.1} parent=219 // loop_exit
            _
        $region220: #{embedding_forward.1} parent=27 // pred_fallthru
          _
        // Predicated region
        $region239: #{embedding_forward.1} parent=27 // pred_check
          _
        $region240: #{embedding_forward.1} parent=27 // pred_check_branch
          %597 = sbr.rel (0) target = $region242
        $region241: #{embedding_forward.1} parent=27 // pred_region
          %598 = vsyncadd [#allocation2], 32
        $region242: #{embedding_forward.1} parent=27 // pred_fallthru
          _
        %s599 = sadd.s32 %s180, 7
        %s600 = sld [smem:[#allocation4 + %s599]]
        %p601 = scmp.gt.s32.totalorder %s600, 0
        %s602 = scalar_select %p601, %s600, 0
        %p603 = scmp.lt.s32.totalorder %s602, 511
        %s604 = scalar_select %p603, %s602, 511
        %s605 = sshrl.u32 %s604, 3
        %s606 = sand.u32 %s604, 7
        %s607 = smul.u32 %s605, 16
        %s608 = sadd.s32 %s606, %s607
        %s609 = scalar_lea.vmem [#allocation5], %s608
        %s610 = scalar_lea.vmem %s172, 7 [#allocation8]
        %p612 = scmp.lt.u32.totalorder 1, 8
        %p613 = pneg %p612
        // Predicated region
        $region243: #{embedding_forward.1} parent=27 // pred_check
          _
        $region244: #{embedding_forward.1} parent=27 // pred_check_branch
          %615 = sbr.rel (%p612) target = $region246
        $region245: #{embedding_forward.1} parent=27 // pred_region
          %s632 = sand.u32 1, 7
          %p633 = scmp.eq.s32.totalorder %s632, 0
          %p634 = pneg %p633
          // Predicated region
          $region258: #{embedding_forward.1} parent=245 // pred_check
            _
          $region259: #{embedding_forward.1} parent=245 // pred_check_branch
            %636 = sbr.rel (%p633) target = $region261
          $region260: #{embedding_forward.1} parent=245 // pred_region
            %s637 = sand.u32 1, 7
            %s638 = ssub.s32 1, %s637
            %s639 = scalar_lea.vmem %s609, %s638 [#allocation5]
            %s640 = ssub.s32 1, %s637
            %s641 = scalar_lea.vmem %s610, %s640 [#allocation8]
            %s642 = sshllo.u32 0, %s637
            loop: start=0, step=1, limit=1
            $region262: #{embedding_forward.1} parent=260 // loop_pre_header
              _
            $region263: #{embedding_forward.1} parent=260 // loop_header
              %s644 = sphi 0, %s648
              %p645 = scmp.ge.s32.totalorder %s644, 1
              %s649 = sphi %s639, %s639
              %s650 = sphi %s641, %s641
            $region264: #{embedding_forward.1} parent=260 // loop_header_branch
              %647 = sbr.rel (%p645) target = $region268
            $region265: #{embedding_forward.1} parent=260 // loop_body
              %v651 = vld [vmem:[%s649] sm:%s642]
              %652 = vst [vmem:[%s650] sm:%s642] %v651
              %v653 = vld [vmem:[%s649 + $0x8] sm:%s642]
              %654 = vst [vmem:[%s650 + $0x8] sm:%s642] %v653
            $region266: #{embedding_forward.1} parent=260 // loop_footer
              %s648 = sadd.s32 1, %s644
            $region267: #{embedding_forward.1} parent=260 // loop_footer_branch
              %643 = sbr.rel target = $region263
            $region268: #{embedding_forward.1} parent=260 // loop_exit
              _
          $region261: #{embedding_forward.1} parent=245 // pred_fallthru
            _
        $region246: #{embedding_forward.1} parent=27 // pred_fallthru
          _
        // Predicated region
        $region247: #{embedding_forward.1} parent=27 // pred_check
          %p616 = pneg %p612
        $region248: #{embedding_forward.1} parent=27 // pred_check_branch
          %618 = sbr.rel (%p616) target = $region250
        $region249: #{embedding_forward.1} parent=27 // pred_region
          %s619 = sshllo.u32 0, 1
          loop: start=0, step=1, limit=1
          $region251: #{embedding_forward.1} parent=249 // loop_pre_header
            _
          $region252: #{embedding_forward.1} parent=249 // loop_header
            %s621 = sphi 0, %s625
            %p622 = scmp.ge.s32.totalorder %s621, 1
            %s626 = sphi %s609, %s609
            %s627 = sphi %s610, %s610
          $region253: #{embedding_forward.1} parent=249 // loop_header_branch
            %624 = sbr.rel (%p622) target = $region257
          $region254: #{embedding_forward.1} parent=249 // loop_body
            %v628 = vld [vmem:[%s626] sm:%s619]
            %629 = vst [vmem:[%s627] sm:%s619] %v628
            %v630 = vld [vmem:[%s626 + $0x8] sm:%s619]
            %631 = vst [vmem:[%s627 + $0x8] sm:%s619] %v630
          $region255: #{embedding_forward.1} parent=249 // loop_footer
            %s625 = sadd.s32 1, %s621
          $region256: #{embedding_forward.1} parent=249 // loop_footer_branch
            %620 = sbr.rel target = $region252
          $region257: #{embedding_forward.1} parent=249 // loop_exit
            _
        $region250: #{embedding_forward.1} parent=27 // pred_fallthru
          _
        // Predicated region
        $region269: #{embedding_forward.1} parent=27 // pred_check
          _
        $region270: #{embedding_forward.1} parent=27 // pred_check_branch
          %657 = sbr.rel (0) target = $region272
        $region271: #{embedding_forward.1} parent=27 // pred_region
          %658 = vsyncadd [#allocation2], 32
        $region272: #{embedding_forward.1} parent=27 // pred_fallthru
          _
        %s659 = smul.u32 1, 2
        %s660 = sshll.u32 %s659, 4
        %661 = dma.done [#allocation2], %s660
        %s662 = sshll.u32 %s659, 4
        %663 = dma.done [#allocation2], %s662
        %s664 = sshll.u32 %s659, 4
        %665 = dma.done [#allocation2], %s664
        %s666 = sshll.u32 %s659, 4
        %667 = dma.done [#allocation2], %s666
        %s668 = sshll.u32 %s659, 4
        %669 = dma.done [#allocation2], %s668
        %s670 = sshll.u32 %s659, 4
        %671 = dma.done [#allocation2], %s670
        %s672 = sshll.u32 %s659, 4
        %673 = dma.done [#allocation2], %s672
        %s674 = sshll.u32 %s659, 4
        %675 = dma.done [#allocation2], %s674
        %s676 = smul.u32 0, 2
        %s677 = smul.addr %s676, 8
        %s678 = scalar_lea.vmem %s172, %s677 [#allocation8]
        %v679 = vld [vmem:[%s678] sm:$0xff]
        %v680 = vld [vmem:[%s678 + $0x8] sm:$0xff]
        %s681 = smul.addr %s676, 8
        %s682 = scalar_lea.vmem %s177, %s681
        %v683 = vld [vmem:[%s682] sm:$0xff]
        %v684 = vld [vmem:[%s682 + $0x8] sm:$0xff]
        %v685 = vadd.f32 %v679, %v683
        %v686 = vadd.f32 %v680, %v684
        %687 = vst [vmem:[%s678] sm:$0xff] %v685
        %688 = vst [vmem:[%s678 + $0x8] sm:$0xff] %v686
        %s689 = sand.u32 %s93, 1
        %s690 = scalar_lea.sflag [#allocation7], %s689
        %s691 = sand.u32 %s93, 1
        %s692 = smul.addr %s691, 16
        %s693 = scalar_lea.vmem [#allocation8], %s692
        // Predicated region
        $region273: #{embedding_forward.1} parent=27 // pred_check
          %p694 = pneg %p103
        $region274: #{embedding_forward.1} parent=27 // pred_check_branch
          %696 = sbr.rel (%p694) target = $region276
        $region275: #{embedding_forward.1} parent=27 // pred_region
          %s698 = ssub.s32 256, 256
          %699 = vsyncadd %s690, %s698
          %s700 = smul.addr %s28, 2
          %s701 = smul.addr %s29, 2
          %s702 = sadd.s32 %s700, %s701
          %s703 = smul.addr %s702, 128
          %s704 = scalar_lea.hbm %s3, %s703
          %s706 = sshll.u32 %s693, 4
          %s707 = int_to_ptr.vmem [resolvable:$true] %s706
          %709 = dma.vmem_to_hbm [thread:$0]  %s707, 256, %s704, %s690
        $region276: #{embedding_forward.1} parent=27 // pred_fallthru
          _
      $region28: #{embedding_forward.1} parent=5 // pred_fallthru
        _
      %p710 = scmp.le.s32.totalorder 2, %s19
      // Predicated region
      $region277: #{embedding_forward.1} parent=5 // pred_check
        %p711 = pneg %p710
      $region278: #{embedding_forward.1} parent=5 // pred_check_branch
        %713 = sbr.rel (%p711) target = $region280
      $region279: #{embedding_forward.1} parent=5 // pred_region
        %s714 = ssub.s32 %s19, 2
        // Predicated region
        $region281: #{embedding_forward.1} parent=279 // pred_check
          %p715 = pneg %p109
        $region282: #{embedding_forward.1} parent=279 // pred_check_branch
          %717 = sbr.rel (%p715) target = $region284
        $region283: #{embedding_forward.1} parent=279 // pred_region
          %s718 = sand.u32 %s94, 1
          %s719 = scalar_lea.sflag [#allocation7], %s718
          %s720 = sand.u32 %s94, 1
          %s721 = smul.addr %s720, 16
          %s722 = scalar_lea.vmem [#allocation8], %s721
          %723 = dma.done %s719, 256
        $region284: #{embedding_forward.1} parent=279 // pred_fallthru
          _
      $region280: #{embedding_forward.1} parent=5 // pred_fallthru
        _
    $region6: #{embedding_forward.1} parent=1 // loop_footer
      %s23 = sadd.s32 1, %s19
    $region7: #{embedding_forward.1} parent=1 // loop_footer_branch
      %18 = sbr.rel target = $region3
    $region8: #{embedding_forward.1} parent=1 // loop_exit
      _
    %724 = vsyncpa [#allocation6], 1
    %s725 = scalar_lea.sflag [#allocation6], 1
    %726 = vsyncpa %s725, 1
    %727 = vsyncpa [#allocation7], 1
    %s728 = scalar_lea.sflag [#allocation7], 1
    %729 = vsyncpa %s728, 1
  %730 = vsyncmov [#allocation2]
  %s731 = vpop.sfrf %730
  %p732 = scmp.eq.s32.totalorder %s731, 0
  %p733 = pneg %p732
  %735 = shalt.err (%p733)

</llo_original>
